<compile_context>
chip_gen: v5e
topology: v5e:2x2
jax: 0.10.0
libtpu: 0.0.40
codegen_flags: <defaults>
</compile_context>

<pallas_src>
import jax
import jax.numpy as jnp
import numpy as np
from jax.experimental import pallas as pl
from jax.experimental.pallas import tpu as pltpu

EPS = 1e-5
_PARALLEL = pltpu.CompilerParams(dimension_semantics=("parallel",))


def _round_up(x, m):
    return (x + m - 1) // m * m


def _pick_tile(mp, candidates):
    """Largest tile dividing mp with >= 2 grid steps (v7x has 2 TCs); else the
    largest candidate that divides mp."""
    for t in candidates:
        if mp % t == 0 and mp // t >= 2:
            return t
    for t in candidates:
        if mp % t == 0:
            return t
    return mp


def _conv_row_tile(mp, k, cp):
    """Conv row tile: prefer 512, but keep the double-buffered footprint well
    under v7x's 32 MiB scoped VMEM and keep >= 2 grid steps."""
    for t in (512, 256):
        vmem = 2 * t * (k + cp) * 2 + 2 * k * cp * 2  # bf16 in/out + weight, x2 buffers
        if mp % t == 0 and mp // t >= 2 and vmem < 24 * (1 << 20):
            return t
    return 256


# ---------------------------------------------------------------------------
# Kernels
# ---------------------------------------------------------------------------
def conv3x3_stats_kernel(p_ref, w_ref, h_ref, ps_ref):
    """Folded-tap 3x3 conv tile (one MXU matmul) + f32 partial BN statistics.

    p_ref : (tm, K)    bf16  im2col patches (K = round_up(9*C, 128), real taps first)
    w_ref : (K, Cp)    bf16  folded conv weight
    h_ref : (tm, Cp)   bf16  raw (pre-BN) conv output tile (f32-accumulated, then cast)
    ps_ref: (1, 2, Cp) f32   per-tile [sum, sum_of_squares] over rows (pre-cast)
    """
    h = jnp.dot(p_ref[...], w_ref[...], preferred_element_type=jnp.float32)
    h_ref[...] = h.astype(h_ref.dtype)
    s = jnp.sum(h, axis=0, keepdims=True)        # (1, Cp) f32
    ss = jnp.sum(h * h, axis=0, keepdims=True)   # (1, Cp) f32
    ps_ref[...] = jnp.concatenate([s, ss], axis=0)[None]


def bn_relu_kernel(h_ref, scale_ref, shift_ref, y_ref):
    """y = relu(h * scale + shift); bf16 load, f32 math, bf16 store (feeds conv2)."""
    y = h_ref[...].astype(jnp.float32) * scale_ref[...] + shift_ref[...]
    y_ref[...] = jnp.maximum(y, 0.0).astype(y_ref.dtype)


def bn_add_relu_kernel(h_ref, scale_ref, shift_ref, res_ref, o_ref):
    """out = relu(h * scale + shift + residual); bf16 loads, f32 math + store."""
    y = (h_ref[...].astype(jnp.float32) * scale_ref[...] + shift_ref[...]
         + res_ref[...].astype(jnp.float32))
    o_ref[...] = jnp.maximum(y, 0.0)


# ---------------------------------------------------------------------------
# pallas_call wrappers
# ---------------------------------------------------------------------------
def _conv3x3(patches, w, tm):
    mp, k = patches.shape
    cp = w.shape[1]
    n = mp // tm
    return pl.pallas_call(
        conv3x3_stats_kernel,
        grid=(n,),
        in_specs=[
            pl.BlockSpec((tm, k), lambda i: (i, 0)),
            pl.BlockSpec((k, cp), lambda i: (0, 0)),
        ],
        out_specs=[
            pl.BlockSpec((tm, cp), lambda i: (i, 0)),
            pl.BlockSpec((1, 2, cp), lambda i: (i, 0, 0)),
        ],
        out_shape=[
            jax.ShapeDtypeStruct((mp, cp), jnp.bfloat16),
            jax.ShapeDtypeStruct((n, 2, cp), jnp.float32),
        ],
        compiler_params=_PARALLEL,
    )(patches, w)


def _bn_relu(h, scale, shift, tm, out_dtype):
    mp, cp = h.shape
    n = mp // tm
    return pl.pallas_call(
        bn_relu_kernel,
        grid=(n,),
        in_specs=[
            pl.BlockSpec((tm, cp), lambda i: (i, 0)),
            pl.BlockSpec((1, cp), lambda i: (0, 0)),
            pl.BlockSpec((1, cp), lambda i: (0, 0)),
        ],
        out_specs=pl.BlockSpec((tm, cp), lambda i: (i, 0)),
        out_shape=jax.ShapeDtypeStruct((mp, cp), out_dtype),
        compiler_params=_PARALLEL,
    )(h, scale, shift)


def _bn_add_relu(h, scale, shift, res, tm):
    mp, cp = h.shape
    n = mp // tm
    return pl.pallas_call(
        bn_add_relu_kernel,
        grid=(n,),
        in_specs=[
            pl.BlockSpec((tm, cp), lambda i: (i, 0)),
            pl.BlockSpec((1, cp), lambda i: (0, 0)),
            pl.BlockSpec((1, cp), lambda i: (0, 0)),
            pl.BlockSpec((tm, cp), lambda i: (i, 0)),  # residual streams with output
        ],
        out_specs=pl.BlockSpec((tm, cp), lambda i: (i, 0)),
        out_shape=jax.ShapeDtypeStruct((mp, cp), jnp.float32),
        compiler_params=_PARALLEL,
    )(h, scale, shift, res)


def _fold_bn(partial_stats, gamma_p, beta_p, count):
    """Fold training-mode batch stats into per-channel affine (scale, shift).

    Note: E[x^2]-E[x]^2 form; fine at these scales, clamped at 0.  A Welford /
    two-pass reduction would be preferable at full ResNet scales."""
    s = jnp.sum(partial_stats, axis=0)             # (2, Cp)
    mean = s[0] / count
    var = jnp.maximum(s[1] / count - mean * mean, 0.0)
    scale = gamma_p * jax.lax.rsqrt(var + EPS)
    shift = beta_p - mean * scale
    return scale.reshape(1, -1), shift.reshape(1, -1)


# ---------------------------------------------------------------------------
# Forward pass
# ---------------------------------------------------------------------------
def basicblock_forward(x_nchw, p, stride=1):
    """Pallas forward of BasicBlock(Input=C, Output=C, stride=1, downsample=None)."""
    assert stride == 1, "downsample is None -> identity residual requires stride 1"
    N, Cin, H, W = x_nchw.shape
    Cout = p['w1'].shape[-1]
    assert Cin == Cout, "identity residual requires Input == Output"
    C = Cout
    Cp = _round_up(C, 128)            # lane-dense output-channel padding
    K = _round_up(9 * C, 128)         # folded contraction dim (taps of UNPADDED C)
    M = N * H * W
    Mp = _round_up(M, 256)            # zero row padding; stats divide by true M

    tm_conv = _conv_row_tile(Mp, K, Cp)
    tm_ew = _pick_tile(Mp, (1024, 512, 256))

    # NCHW -> NHWC (channels unpadded for patch building); bf16 identity residual.
    x = jnp.transpose(x_nchw, (0, 2, 3, 1)).astype(jnp.float32)   # (N,H,W,C)
    res = jnp.pad(x.reshape(M, C).astype(jnp.bfloat16),
                  ((0, Mp - M), (0, Cp - C)))

    def pad_w(w_hwio):                # (3,3,C,C) -> (K, Cp) bf16, taps folded into K
        w = w_hwio.reshape(9 * C, C)
        return jnp.pad(w, ((0, K - 9 * C), (0, Cp - C))).astype(jnp.bfloat16)

    def pad_v(v):                     # (C,) -> (Cp,) f32
        return jnp.pad(v.reshape(-1).astype(jnp.float32), (0, Cp - C))

    w1, w2 = pad_w(p['w1']), pad_w(p['w2'])
    g1, b1 = pad_v(p['g1']), pad_v(p['b1'])
    g2, b2 = pad_v(p['g2']), pad_v(p['b2'])

    def im2col(y_nhwc):
        # Taps of the UNPADDED C channels are concatenated first, then K is
        # padded once -> K = round_up(9*C,128) instead of 9*Cp.
        # TODO(synk): move this into the conv kernel (halo'd row tiles) to avoid
        # materializing the patch matrix in HBM.
        yp = jnp.pad(y_nhwc, ((0, 0), (1, 1), (1, 1), (0, 0)))
        cols = [yp[:, ky:ky + H, kx:kx + W, :] for ky in range(3) for kx in range(3)]
        pat = jnp.concatenate(cols, axis=-1).reshape(M, 9 * C).astype(jnp.bfloat16)
        return jnp.pad(pat, ((0, Mp - M), (0, K - 9 * C)))

    # conv1 (3x3) + BN1 partial stats, then fused affine + ReLU.
    h1, ps1 = _conv3x3(im2col(x), w1, tm_conv)
    sc1, sh1 = _fold_bn(ps1, g1, b1, M)
    y1 = _bn_relu(h1, sc1, sh1, tm_ew, jnp.bfloat16)

    # conv2 (3x3) + BN2 partial stats, then fused affine + residual + ReLU.
    h2, ps2 = _conv3x3(im2col(y1[:M, :C].reshape(N, H, W, C)), w2, tm_conv)
    sc2, sh2 = _fold_bn(ps2, g2, b2, M)
    out = _bn_add_relu(h2, sc2, sh2, res, tm_ew)

    out = out[:M, :C].reshape(N, H, W, C)
    return jnp.transpose(out, (0, 3, 1, 2))   # back to NCHW


def basicblock_reference(x_nchw, p):
    """Pure-JAX f32 reference (lax conv, training-mode BN)."""
    x = jnp.transpose(x_nchw, (0, 2, 3, 1))

    def bn(h, g, b):
        mean = jnp.mean(h, axis=(0, 1, 2), keepdims=True)
        var = jnp.mean((h - mean) ** 2, axis=(0, 1, 2), keepdims=True)
        return (g.reshape(1, 1, 1, -1) * (h - mean) * jax.lax.rsqrt(var + EPS)
                + b.reshape(1, 1, 1, -1))

    def conv(h, w):
        return jax.lax.conv_general_dilated(
            h, w, (1, 1), [(1, 1), (1, 1)],
            dimension_numbers=('NHWC', 'HWIO', 'NHWC'),
            precision=jax.lax.Precision.HIGHEST)

    h = jax.nn.relu(bn(conv(x, p['w1']), p['g1'], p['b1']))
    h = bn(conv(h, p['w2']), p['g2'], p['b2'])
    out = jax.nn.relu(h + x)
    return jnp.transpose(out, (0, 3, 1, 2))


if __name__ == "__main__":
    key = jax.random.PRNGKey(0)
    N, C, H, W = 2, 16, 16, 16        # BasicBlock(Input=16, Output=16, stride=1)
    ks = jax.random.split(key, 7)
    x = jax.random.normal(ks[0], (N, C, H, W), dtype=jnp.float32)
    params = {
        # conv weights stored HWIO (transpose of PyTorch OIHW)
        'w1': jax.random.normal(ks[1], (3, 3, C, C), jnp.float32) / np.sqrt(9 * C),
        'g1': 1.0 + 0.1 * jax.random.normal(ks[2], (C,), jnp.float32),
        'b1': 0.1 * jax.random.normal(ks[3], (C,), jnp.float32),
        'w2': jax.random.normal(ks[4], (3, 3, C, C), jnp.float32) / np.sqrt(9 * C),
        'g2': 1.0 + 0.1 * jax.random.normal(ks[5], (C,), jnp.float32),
        'b2': 0.1 * jax.random.normal(ks[6], (C,), jnp.float32),
    }

    out = jax.jit(basicblock_forward)(x, params)
    out = jax.block_until_ready(out)

    ref = basicblock_reference(x, params)
    out_np, ref_np = np.asarray(out), np.asarray(ref)
    # bf16 matmul inputs / intermediates (f32 accumulation) vs an f32 HIGHEST
    # reference: tolerance is loosened accordingly; a real bug would be O(1) off.
    assert np.mean(np.abs(out_np - ref_np)) < 2e-2, "mean abs error too large"
    np.testing.assert_allclose(out_np, ref_np, atol=1e-1, rtol=1e-1)
    print("KERNEL_OK")
</pallas_src>

<mosaic_0001>
module attributes {stable_mosaic.version = 11 : i64} {
  func.func @conv3x3_stats_kernel(%arg0: i32, %arg1: memref<256x256xbf16, #tpu.memory_space<vmem>>, %arg2: memref<256x128xbf16, #tpu.memory_space<vmem>>, %arg3: memref<256x128xbf16, #tpu.memory_space<vmem>>, %arg4: memref<1x2x128xf32, #tpu.memory_space<vmem>>) attributes {dimension_semantics = [#tpu.dimension_semantics<parallel>], iteration_bounds = array<i64: 2>, scalar_prefetch = 0 : i64, scratch_operands = 0 : i64, tpu.core_type = #tpu.core_type<tc>, window_params = [{transform_indices = @transform_0, window_bounds = array<i64: 256, 256>}, {pipeline_mode = #tpu.pipeline_mode<synchronous>, transform_indices = @transform_1, window_bounds = array<i64: 256, 128>}, {transform_indices = @transform_2, window_bounds = array<i64: 256, 128>}, {transform_indices = @transform_3, window_bounds = array<i64: 1, 2, 128>}]} {
    %c0 = arith.constant 0 : index
    %c0_0 = arith.constant 0 : index
    %0 = vector.load %arg1[%c0, %c0_0] : memref<256x256xbf16, #tpu.memory_space<vmem>>, vector<256x256xbf16>
    %c0_1 = arith.constant 0 : index
    %c0_2 = arith.constant 0 : index
    %1 = vector.load %arg2[%c0_1, %c0_2] : memref<256x128xbf16, #tpu.memory_space<vmem>>, vector<256x128xbf16>
    %cst = arith.constant dense<0.000000e+00> : vector<256x128xf32>
    %2 = tpu.matmul %0, %1, %cst {dimension_numbers = #tpu.dot_dimension_numbers<[1], [0], [0], [1], [0, 0, 1, 1], [], []>} : vector<256x256xbf16>, vector<256x128xbf16>, vector<256x128xf32> -> vector<256x128xf32>
    %3 = arith.truncf %2 : vector<256x128xf32> to vector<256x128xbf16>
    %c0_3 = arith.constant 0 : index
    %c0_4 = arith.constant 0 : index
    %4 = vector.load %arg3[%c0_3, %c0_4] : memref<256x128xbf16, #tpu.memory_space<vmem>>, vector<256x128xbf16>
    tpu.vector_store %arg3[%c0_3, %c0_4], %3 {strides = array<i32>} : memref<256x128xbf16, #tpu.memory_space<vmem>>, vector<256x128xbf16>,
    %cst_5 = arith.constant dense<0.000000e+00> : vector<128xf32>
    %5 = vector.multi_reduction <add>, %2, %cst_5 [0] : vector<256x128xf32> to vector<128xf32>
    %6 = vector.shape_cast %5 : vector<128xf32> to vector<1x128xf32>
    %7 = arith.mulf %2, %2 : vector<256x128xf32>
    %cst_6 = arith.constant dense<0.000000e+00> : vector<128xf32>
    %8 = vector.multi_reduction <add>, %7, %cst_6 [0] : vector<256x128xf32> to vector<128xf32>
    %9 = vector.shape_cast %8 : vector<128xf32> to vector<1x128xf32>
    %10 = tpu.concatenate %6, %9 in 0 : vector<1x128xf32>, vector<1x128xf32> -> vector<2x128xf32>
    %11 = vector.shape_cast %10 : vector<2x128xf32> to vector<1x2x128xf32>
    %c0_7 = arith.constant 0 : index
    %c0_8 = arith.constant 0 : index
    %c0_9 = arith.constant 0 : index
    %12 = vector.load %arg4[%c0_7, %c0_8, %c0_9] : memref<1x2x128xf32, #tpu.memory_space<vmem>>, vector<1x2x128xf32>
    tpu.vector_store %arg4[%c0_7, %c0_8, %c0_9], %11 {strides = array<i32>} : memref<1x2x128xf32, #tpu.memory_space<vmem>>, vector<1x2x128xf32>,
    return
  }
  func.func @transform_0(%arg0: i32) -> (i32, i32) {
    %c0_i32 = arith.constant 0 : i32
    %c0_i32_0 = arith.constant 0 : i32
    return %arg0, %c0_i32 : i32, i32
  }
  func.func @transform_1(%arg0: i32) -> (i32, i32) {
    %c0_i32 = arith.constant 0 : i32
    %c0_i32_0 = arith.constant 0 : i32
    %c0_i32_1 = arith.constant 0 : i32
    return %c0_i32, %c0_i32_0 : i32, i32
  }
  func.func @transform_2(%arg0: i32) -> (i32, i32) {
    %c0_i32 = arith.constant 0 : i32
    %c0_i32_0 = arith.constant 0 : i32
    return %arg0, %c0_i32 : i32, i32
  }
  func.func @transform_3(%arg0: i32) -> (i32, i32, i32) {
    %c0_i32 = arith.constant 0 : i32
    %c0_i32_0 = arith.constant 0 : i32
    %c0_i32_1 = arith.constant 0 : i32
    return %arg0, %c0_i32, %c0_i32_0 : i32, i32, i32
  }
}

module attributes {stable_mosaic.version = 11 : i64} {
  func.func @bn_relu_kernel(%arg0: i32, %arg1: memref<256x128xbf16, #tpu.memory_space<vmem>>, %arg2: memref<1x128xf32, #tpu.memory_space<vmem>>, %arg3: memref<1x128xf32, #tpu.memory_space<vmem>>, %arg4: memref<256x128xbf16, #tpu.memory_space<vmem>>) attributes {dimension_semantics = [#tpu.dimension_semantics<parallel>], iteration_bounds = array<i64: 2>, scalar_prefetch = 0 : i64, scratch_operands = 0 : i64, tpu.core_type = #tpu.core_type<tc>, window_params = [{transform_indices = @transform_0, window_bounds = array<i64: 256, 128>}, {pipeline_mode = #tpu.pipeline_mode<synchronous>, transform_indices = @transform_1, window_bounds = array<i64: 1, 128>}, {pipeline_mode = #tpu.pipeline_mode<synchronous>, transform_indices = @transform_2, window_bounds = array<i64: 1, 128>}, {transform_indices = @transform_3, window_bounds = array<i64: 256, 128>}]} {
    %c0 = arith.constant 0 : index
    %c0_0 = arith.constant 0 : index
    %0 = vector.load %arg1[%c0, %c0_0] : memref<256x128xbf16, #tpu.memory_space<vmem>>, vector<256x128xbf16>
    %1 = arith.extf %0 : vector<256x128xbf16> to vector<256x128xf32>
    %c0_1 = arith.constant 0 : index
    %c0_2 = arith.constant 0 : index
    %2 = vector.load %arg2[%c0_1, %c0_2] : memref<1x128xf32, #tpu.memory_space<vmem>>, vector<1x128xf32>
    %3 = vector.broadcast %2 : vector<1x128xf32> to vector<256x128xf32>
    %4 = arith.mulf %1, %3 : vector<256x128xf32>
    %c0_3 = arith.constant 0 : index
    %c0_4 = arith.constant 0 : index
    %5 = vector.load %arg3[%c0_3, %c0_4] : memref<1x128xf32, #tpu.memory_space<vmem>>, vector<1x128xf32>
    %6 = vector.broadcast %5 : vector<1x128xf32> to vector<256x128xf32>
    %7 = arith.addf %4, %6 : vector<256x128xf32>
    %cst = arith.constant 0.000000e+00 : f32
    %8 = vector.broadcast %cst : f32 to vector<256x128xf32>
    %9 = arith.maximumf %7, %8 : vector<256x128xf32>
    %10 = arith.truncf %9 : vector<256x128xf32> to vector<256x128xbf16>
    %c0_5 = arith.constant 0 : index
    %c0_6 = arith.constant 0 : index
    %11 = vector.load %arg4[%c0_5, %c0_6] : memref<256x128xbf16, #tpu.memory_space<vmem>>, vector<256x128xbf16>
    tpu.vector_store %arg4[%c0_5, %c0_6], %10 {strides = array<i32>} : memref<256x128xbf16, #tpu.memory_space<vmem>>, vector<256x128xbf16>,
    return
  }
  func.func @transform_0(%arg0: i32) -> (i32, i32) {
    %c0_i32 = arith.constant 0 : i32
    %c0_i32_0 = arith.constant 0 : i32
    return %arg0, %c0_i32 : i32, i32
  }
  func.func @transform_1(%arg0: i32) -> (i32, i32) {
    %c0_i32 = arith.constant 0 : i32
    %c0_i32_0 = arith.constant 0 : i32
    %c0_i32_1 = arith.constant 0 : i32
    return %c0_i32, %c0_i32_0 : i32, i32
  }
  func.func @transform_2(%arg0: i32) -> (i32, i32) {
    %c0_i32 = arith.constant 0 : i32
    %c0_i32_0 = arith.constant 0 : i32
    %c0_i32_1 = arith.constant 0 : i32
    return %c0_i32, %c0_i32_0 : i32, i32
  }
  func.func @transform_3(%arg0: i32) -> (i32, i32) {
    %c0_i32 = arith.constant 0 : i32
    %c0_i32_0 = arith.constant 0 : i32
    return %arg0, %c0_i32 : i32, i32
  }
}

module attributes {stable_mosaic.version = 11 : i64} {
  func.func @bn_add_relu_kernel(%arg0: i32, %arg1: memref<256x128xbf16, #tpu.memory_space<vmem>>, %arg2: memref<1x128xf32, #tpu.memory_space<vmem>>, %arg3: memref<1x128xf32, #tpu.memory_space<vmem>>, %arg4: memref<256x128xbf16, #tpu.memory_space<vmem>>, %arg5: memref<256x128xf32, #tpu.memory_space<vmem>>) attributes {dimension_semantics = [#tpu.dimension_semantics<parallel>], iteration_bounds = array<i64: 2>, scalar_prefetch = 0 : i64, scratch_operands = 0 : i64, tpu.core_type = #tpu.core_type<tc>, window_params = [{transform_indices = @transform_0, window_bounds = array<i64: 256, 128>}, {pipeline_mode = #tpu.pipeline_mode<synchronous>, transform_indices = @transform_1, window_bounds = array<i64: 1, 128>}, {pipeline_mode = #tpu.pipeline_mode<synchronous>, transform_indices = @transform_2, window_bounds = array<i64: 1, 128>}, {transform_indices = @transform_3, window_bounds = array<i64: 256, 128>}, {transform_indices = @transform_4, window_bounds = array<i64: 256, 128>}]} {
    %c0 = arith.constant 0 : index
    %c0_0 = arith.constant 0 : index
    %0 = vector.load %arg1[%c0, %c0_0] : memref<256x128xbf16, #tpu.memory_space<vmem>>, vector<256x128xbf16>
    %1 = arith.extf %0 : vector<256x128xbf16> to vector<256x128xf32>
    %c0_1 = arith.constant 0 : index
    %c0_2 = arith.constant 0 : index
    %2 = vector.load %arg2[%c0_1, %c0_2] : memref<1x128xf32, #tpu.memory_space<vmem>>, vector<1x128xf32>
    %3 = vector.broadcast %2 : vector<1x128xf32> to vector<256x128xf32>
    %4 = arith.mulf %1, %3 : vector<256x128xf32>
    %c0_3 = arith.constant 0 : index
    %c0_4 = arith.constant 0 : index
    %5 = vector.load %arg3[%c0_3, %c0_4] : memref<1x128xf32, #tpu.memory_space<vmem>>, vector<1x128xf32>
    %6 = vector.broadcast %5 : vector<1x128xf32> to vector<256x128xf32>
    %7 = arith.addf %4, %6 : vector<256x128xf32>
    %c0_5 = arith.constant 0 : index
    %c0_6 = arith.constant 0 : index
    %8 = vector.load %arg4[%c0_5, %c0_6] : memref<256x128xbf16, #tpu.memory_space<vmem>>, vector<256x128xbf16>
    %9 = arith.extf %8 : vector<256x128xbf16> to vector<256x128xf32>
    %10 = arith.addf %7, %9 : vector<256x128xf32>
    %cst = arith.constant 0.000000e+00 : f32
    %11 = vector.broadcast %cst : f32 to vector<256x128xf32>
    %12 = arith.maximumf %10, %11 : vector<256x128xf32>
    %c0_7 = arith.constant 0 : index
    %c0_8 = arith.constant 0 : index
    %13 = vector.load %arg5[%c0_7, %c0_8] : memref<256x128xf32, #tpu.memory_space<vmem>>, vector<256x128xf32>
    tpu.vector_store %arg5[%c0_7, %c0_8], %12 {strides = array<i32>} : memref<256x128xf32, #tpu.memory_space<vmem>>, vector<256x128xf32>,
    return
  }
  func.func @transform_0(%arg0: i32) -> (i32, i32) {
    %c0_i32 = arith.constant 0 : i32
    %c0_i32_0 = arith.constant 0 : i32
    return %arg0, %c0_i32 : i32, i32
  }
  func.func @transform_1(%arg0: i32) -> (i32, i32) {
    %c0_i32 = arith.constant 0 : i32
    %c0_i32_0 = arith.constant 0 : i32
    %c0_i32_1 = arith.constant 0 : i32
    return %c0_i32, %c0_i32_0 : i32, i32
  }
  func.func @transform_2(%arg0: i32) -> (i32, i32) {
    %c0_i32 = arith.constant 0 : i32
    %c0_i32_0 = arith.constant 0 : i32
    %c0_i32_1 = arith.constant 0 : i32
    return %c0_i32, %c0_i32_0 : i32, i32
  }
  func.func @transform_3(%arg0: i32) -> (i32, i32) {
    %c0_i32 = arith.constant 0 : i32
    %c0_i32_0 = arith.constant 0 : i32
    return %arg0, %c0_i32 : i32, i32
  }
  func.func @transform_4(%arg0: i32) -> (i32, i32) {
    %c0_i32 = arith.constant 0 : i32
    %c0_i32_0 = arith.constant 0 : i32
    return %arg0, %c0_i32 : i32, i32
  }
}

</mosaic_0001>

<llo_original>
// kernel: basicblock_forward.4
$region0: #{basicblock_forward.4}
  #allocation0 [shape = 'u32[]', space=smem, size = 0x4, offset = 0x4, fixed_abs, tag = 'smem constant byte address 0x4 - core index']
  #allocation1 [shape = 'u32[72,128]{1,0:T(1,128)}', space=vmem, size = 0x9000, scoped, tag = 'internal scratch']
  %s0 = inlined_call_operand.vmem [shape: bf16[512,256], index: 0, kind: input, shape index: {}]
  %s1 = inlined_call_operand.vmem [shape: bf16[256,128], index: 1, kind: input, shape index: {}]
  %s2 = inlined_call_operand.vmem [shape: bf16[512,128], index: 2, kind: output, shape index: {0}]
  %s3 = inlined_call_operand.vmem [shape: f32[2,2,128], index: 3, kind: output, shape index: {1}]
  %4 = xla_tuple %s2, %s3
  %s5 = sld [smem:[#allocation0]]
  $region49: #{basicblock_forward.4} parent=0
    _
  %s7 = ssub.s32 1, %s5
  %s8 = scalar_select 0, %s7, %s5
  loop: start=0, step=1, limit=4
  $region2: #{basicblock_forward.4} parent=0 // loop_pre_header
    _
  $region3: #{basicblock_forward.4} parent=0 // loop_header
    %s10 = sphi 0, %s14
    %p11 = scmp.ge.s32.totalorder %s10, 4
    %s20 = sphi 0, %s22
    %s23 = sphi 0, %s20
    %s24 = sphi 0, %s23
    %s40 = sphi 0, %s24
    %s44 = sphi 0, %s44
    %s46 = sphi 0, %s44
    %s47 = sphi 0, %s46
    %s61 = sphi 0, %s47
    %s67 = sphi 0, %s69
    %s70 = sphi 0, %s67
    %s71 = sphi 0, %s70
    %s87 = sphi 0, %s71
    %s93 = sphi 0, %s95
    %s96 = sphi 0, %s93
    %s97 = sphi 0, %s96
    %s113 = sphi 0, %s97
  $region4: #{basicblock_forward.4} parent=0 // loop_header_branch
    %13 = sbr.rel (%p11) target = $region8
  $region5: #{basicblock_forward.4} parent=0 // loop_body
    %s15 = ssub.s32 %s10, 1
    %s16 = ssub.s32 %s10, 2
    %s17 = sadd.s32 %s10, 1
    %s18 = ssub.s32 %s10, %s17
    %p19 = scmp.eq.s32.totalorder %s18, 0
    %s21 = sadd.s32 %s20, 1
    %s22 = scalar_select %p19, %s20, %s21
    %p25 = pneg %p19
    %p26 = scmp.eq.s32.totalorder %s10, 1
    %p27 = por %p25, %p26
    %p28 = scmp.ne.s32.totalorder %s20, %s23
    %p29 = scmp.eq.s32.totalorder %s10, 0
    %p30 = por %p28, %p29
    %p31 = scmp.ne.s32.totalorder %s20, %s23
    %p32 = scmp.eq.s32.totalorder %s15, 1
    %p33 = por %p31, %p32
    %p34 = scmp.ne.s32.totalorder %s23, %s24
    %p35 = scmp.eq.s32.totalorder %s15, 0
    %p36 = por %p34, %p35
    %p37 = scmp.ne.s32.totalorder %s23, %s24
    %p38 = scmp.eq.s32.totalorder %s16, 1
    %p39 = por %p37, %p38
    %p41 = scmp.ne.s32.totalorder %s24, %s40
    %p42 = scmp.eq.s32.totalorder %s16, 0
    %p43 = por %p41, %p42
    %s45 = sadd.s32 %s44, 1
    %p48 = scmp.eq.s32.totalorder %s10, 1
    %p49 = scmp.ne.s32.totalorder %s44, %s46
    %p50 = scmp.eq.s32.totalorder %s10, 0
    %p51 = por %p49, %p50
    %p52 = scmp.ne.s32.totalorder %s44, %s46
    %p53 = scmp.eq.s32.totalorder %s15, 1
    %p54 = por %p52, %p53
    %p55 = scmp.ne.s32.totalorder %s46, %s47
    %p56 = scmp.eq.s32.totalorder %s15, 0
    %p57 = por %p55, %p56
    %p58 = scmp.ne.s32.totalorder %s46, %s47
    %p59 = scmp.eq.s32.totalorder %s16, 1
    %p60 = por %p58, %p59
    %p62 = scmp.ne.s32.totalorder %s47, %s61
    %p63 = scmp.eq.s32.totalorder %s16, 0
    %p64 = por %p62, %p63
    %s65 = ssub.s32 %s10, %s17
    %p66 = scmp.eq.s32.totalorder %s65, 0
    %s68 = sadd.s32 %s67, 1
    %s69 = scalar_select %p66, %s67, %s68
    %p72 = pneg %p66
    %p73 = scmp.eq.s32.totalorder %s10, 1
    %p74 = por %p72, %p73
    %p75 = scmp.ne.s32.totalorder %s67, %s70
    %p76 = scmp.eq.s32.totalorder %s10, 0
    %p77 = por %p75, %p76
    %p78 = scmp.ne.s32.totalorder %s67, %s70
    %p79 = scmp.eq.s32.totalorder %s15, 1
    %p80 = por %p78, %p79
    %p81 = scmp.ne.s32.totalorder %s70, %s71
    %p82 = scmp.eq.s32.totalorder %s15, 0
    %p83 = por %p81, %p82
    %p84 = scmp.ne.s32.totalorder %s70, %s71
    %p85 = scmp.eq.s32.totalorder %s16, 1
    %p86 = por %p84, %p85
    %p88 = scmp.ne.s32.totalorder %s71, %s87
    %p89 = scmp.eq.s32.totalorder %s16, 0
    %p90 = por %p88, %p89
    %s91 = ssub.s32 %s10, %s17
    %p92 = scmp.eq.s32.totalorder %s91, 0
    %s94 = sadd.s32 %s93, 1
    %s95 = scalar_select %p92, %s93, %s94
    %p98 = pneg %p92
    %p99 = scmp.eq.s32.totalorder %s10, 1
    %p100 = por %p98, %p99
    %p101 = scmp.ne.s32.totalorder %s93, %s96
    %p102 = scmp.eq.s32.totalorder %s10, 0
    %p103 = por %p101, %p102
    %p104 = scmp.ne.s32.totalorder %s93, %s96
    %p105 = scmp.eq.s32.totalorder %s15, 1
    %p106 = por %p104, %p105
    %p107 = scmp.ne.s32.totalorder %s96, %s97
    %p108 = scmp.eq.s32.totalorder %s15, 0
    %p109 = por %p107, %p108
    %p110 = scmp.ne.s32.totalorder %s96, %s97
    %p111 = scmp.eq.s32.totalorder %s16, 1
    %p112 = por %p110, %p111
    %p114 = scmp.ne.s32.totalorder %s97, %s113
    %p115 = scmp.eq.s32.totalorder %s16, 0
    %p116 = por %p114, %p115
    %p117 = scmp.le.s32.totalorder 1, %s10
    %p118 = scmp.lt.s32.totalorder %s10, 3
    %p119 = pnand %p117, %p118
    %p120 = pneg %p119
    // Predicated region
    $region9: #{basicblock_forward.4} parent=5 // pred_check
      _
    $region10: #{basicblock_forward.4} parent=5 // pred_check_branch
      %122 = sbr.rel (%p119) target = $region12
    $region11: #{basicblock_forward.4} parent=5 // pred_region
      %s123 = ssub.s32 %s10, 1
      // Predicated region
      $region13: #{basicblock_forward.4} parent=11 // pred_check
        %p124 = pneg %p57
      $region14: #{basicblock_forward.4} parent=11 // pred_check_branch
        %126 = sbr.rel (%p124) target = $region16
      $region15: #{basicblock_forward.4} parent=11 // pred_region
        _
      $region16: #{basicblock_forward.4} parent=11 // pred_fallthru
        _
    $region12: #{basicblock_forward.4} parent=5 // pred_fallthru
      _
    %p127 = scmp.lt.s32.totalorder %s10, 2
    // Predicated region
    $region17: #{basicblock_forward.4} parent=5 // pred_check
      %p128 = pneg %p127
    $region18: #{basicblock_forward.4} parent=5 // pred_check_branch
      %130 = sbr.rel (%p128) target = $region20
    $region19: #{basicblock_forward.4} parent=5 // pred_region
      // Predicated region
      $region21: #{basicblock_forward.4} parent=19 // pred_check
        %p131 = pneg %p30
      $region22: #{basicblock_forward.4} parent=19 // pred_check_branch
        %133 = sbr.rel (%p131) target = $region24
      $region23: #{basicblock_forward.4} parent=19 // pred_region
        %s134 = smul.u32 32, %s10
        %p135 = scmp.lt.s32.totalorder %s134, 63
        %s136 = scalar_select %p135, %s134, 63
        %s137 = smul.addr %s136, 2
        %s138 = smul.addr %s137, 4
        %s139 = scalar_lea.vmem %s0, %s138
        %s140 = smul.u32 32, %s10
      $region24: #{basicblock_forward.4} parent=19 // pred_fallthru
        _
    $region20: #{basicblock_forward.4} parent=5 // pred_fallthru
      _
    %p141 = scmp.le.s32.totalorder 1, %s10
    %p142 = scmp.lt.s32.totalorder %s10, 3
    %p143 = pnand %p141, %p142
    %p144 = pneg %p143
    // Predicated region
    $region25: #{basicblock_forward.4} parent=5 // pred_check
      _
    $region26: #{basicblock_forward.4} parent=5 // pred_check_branch
      %146 = sbr.rel (%p143) target = $region28
    $region27: #{basicblock_forward.4} parent=5 // pred_region
      %s147 = ssub.s32 %s10, 1
      %s148 = smul.u32 32, %s15
      %p149 = scmp.lt.s32.totalorder %s148, 63
      %s150 = scalar_select %p149, %s148, 63
      %s151 = smul.addr %s150, 2
      %s152 = smul.addr %s151, 4
      %s153 = scalar_lea.vmem %s0, %s152
      %p154 = pneg %p36
      %p155 = pneg %p33
      %p156 = pneg %p57
      %p157 = pneg %p54
      %p158 = pneg %p83
      %p159 = pneg %p80
      %s160 = smul.u32 32, %s15
      %p161 = scmp.lt.s32.totalorder %s160, 63
      %s162 = scalar_select %p161, %s160, 63
      %s163 = smul.addr %s162, 4
      %s164 = scalar_lea.vmem %s2, %s163
      %p165 = pneg %p109
      %p166 = pneg %p106
      %p167 = scmp.lt.s32.totalorder %s15, 1
      %s168 = scalar_select %p167, %s15, 1
      %s169 = smul.addr %s168, 2
      %s170 = scalar_lea.vmem %s3, %s169
      %s171 = smul.u32 32, %s15
      %p172 = scmp.lt.s32.totalorder %s171, 63
      %s173 = scalar_select %p172, %s171, 63
      %s174 = smul.addr %s173, 2
      %s175 = smul.addr %s174, 4
      %s176 = scalar_lea.vmem %s0, %s175
      %s177 = smul.u32 32, %s15
      %s178 = smul.u32 32, %s15
      %p179 = scmp.lt.s32.totalorder %s178, 63
      %s180 = scalar_select %p179, %s178, 63
      %s181 = smul.addr %s180, 4
      %s182 = scalar_lea.vmem %s2, %s181
      %s183 = smul.u32 32, %s15
      %p184 = scmp.lt.s32.totalorder %s15, 1
      %s185 = scalar_select %p184, %s15, 1
      %s186 = smul.addr %s185, 2
      %s187 = scalar_lea.vmem %s3, %s186
      %v188 = vld [vmem:[%s176] sm:$0xff]
      %v189 = vld [vmem:[%s176 + $0x8] sm:$0xff]
      %v190 = vld [vmem:[%s176 + $0x10] sm:$0xff]
      %v191 = vld [vmem:[%s176 + $0x18] sm:$0xff]
      %v192 = vld [vmem:[%s176 + $0x20] sm:$0xff]
      %v193 = vld [vmem:[%s176 + $0x28] sm:$0xff]
      %v194 = vld [vmem:[%s176 + $0x30] sm:$0xff]
      %v195 = vld [vmem:[%s176 + $0x38] sm:$0xff]
      %v196 = vld [vmem:[%s176 + $0x40] sm:$0xff]
      %v197 = vld [vmem:[%s176 + $0x48] sm:$0xff]
      %v198 = vld [vmem:[%s176 + $0x50] sm:$0xff]
      %v199 = vld [vmem:[%s176 + $0x58] sm:$0xff]
      %v200 = vld [vmem:[%s176 + $0x60] sm:$0xff]
      %v201 = vld [vmem:[%s176 + $0x68] sm:$0xff]
      %v202 = vld [vmem:[%s176 + $0x70] sm:$0xff]
      %v203 = vld [vmem:[%s176 + $0x78] sm:$0xff]
      %v204 = vld [vmem:[%s176 + $0x80] sm:$0xff]
      %v205 = vld [vmem:[%s176 + $0x88] sm:$0xff]
      %v206 = vld [vmem:[%s176 + $0x90] sm:$0xff]
      %v207 = vld [vmem:[%s176 + $0x98] sm:$0xff]
      %v208 = vld [vmem:[%s176 + $0xa0] sm:$0xff]
      %v209 = vld [vmem:[%s176 + $0xa8] sm:$0xff]
      %v210 = vld [vmem:[%s176 + $0xb0] sm:$0xff]
      %v211 = vld [vmem:[%s176 + $0xb8] sm:$0xff]
      %v212 = vld [vmem:[%s176 + $0xc0] sm:$0xff]
      %v213 = vld [vmem:[%s176 + $0xc8] sm:$0xff]
      %v214 = vld [vmem:[%s176 + $0xd0] sm:$0xff]
      %v215 = vld [vmem:[%s176 + $0xd8] sm:$0xff]
      %v216 = vld [vmem:[%s176 + $0xe0] sm:$0xff]
      %v217 = vld [vmem:[%s176 + $0xe8] sm:$0xff]
      %v218 = vld [vmem:[%s176 + $0xf0] sm:$0xff]
      %v219 = vld [vmem:[%s176 + $0xf8] sm:$0xff]
      %v220 = vld [vmem:[%s1] sm:$0xf]
      %v221 = vld [vmem:[%s1 + $0x4] sm:$0xf]
      %v222 = vld [vmem:[%s1 + $0x8] sm:$0xf]
      %v223 = vld [vmem:[%s1 + $0xc] sm:$0xf]
      %v224 = vld [vmem:[%s1 + $0x10] sm:$0xf]
      %v225 = vld [vmem:[%s1 + $0x14] sm:$0xf]
      %v226 = vld [vmem:[%s1 + $0x18] sm:$0xf]
      %v227 = vld [vmem:[%s1 + $0x1c] sm:$0xf]
      %v228 = vld [vmem:[%s1 + $0x20] sm:$0xf]
      %v229 = vld [vmem:[%s1 + $0x24] sm:$0xf]
      %v230 = vld [vmem:[%s1 + $0x28] sm:$0xf]
      %v231 = vld [vmem:[%s1 + $0x2c] sm:$0xf]
      %v232 = vld [vmem:[%s1 + $0x30] sm:$0xf]
      %v233 = vld [vmem:[%s1 + $0x34] sm:$0xf]
      %v234 = vld [vmem:[%s1 + $0x38] sm:$0xf]
      %v235 = vld [vmem:[%s1 + $0x3c] sm:$0xf]
      %v236 = vld [vmem:[%s1 + $0x40] sm:$0xf]
      %v237 = vld [vmem:[%s1 + $0x44] sm:$0xf]
      %v238 = vld [vmem:[%s1 + $0x48] sm:$0xf]
      %v239 = vld [vmem:[%s1 + $0x4c] sm:$0xf]
      %v240 = vld [vmem:[%s1 + $0x50] sm:$0xf]
      %v241 = vld [vmem:[%s1 + $0x54] sm:$0xf]
      %v242 = vld [vmem:[%s1 + $0x58] sm:$0xf]
      %v243 = vld [vmem:[%s1 + $0x5c] sm:$0xf]
      %v244 = vld [vmem:[%s1 + $0x60] sm:$0xf]
      %v245 = vld [vmem:[%s1 + $0x64] sm:$0xf]
      %v246 = vld [vmem:[%s1 + $0x68] sm:$0xf]
      %v247 = vld [vmem:[%s1 + $0x6c] sm:$0xf]
      %v248 = vld [vmem:[%s1 + $0x70] sm:$0xf]
      %v249 = vld [vmem:[%s1 + $0x74] sm:$0xf]
      %v250 = vld [vmem:[%s1 + $0x78] sm:$0xf]
      %v251 = vld [vmem:[%s1 + $0x7c] sm:$0xf]
      %v284 = vunpack.c.l.b16 %v188
      %v285 = vunpack.c.h.b16 %v188
      %v286 = vunpack.c.l.b16 %v189
      %v287 = vunpack.c.h.b16 %v189
      %v288 = vunpack.c.l.b16 %v190
      %v289 = vunpack.c.h.b16 %v190
      %v290 = vunpack.c.l.b16 %v191
      %v291 = vunpack.c.h.b16 %v191
      %v292 = vunpack.c.l.b16 %v192
      %v293 = vunpack.c.h.b16 %v192
      %v294 = vunpack.c.l.b16 %v193
      %v295 = vunpack.c.h.b16 %v193
      %v296 = vunpack.c.l.b16 %v194
      %v297 = vunpack.c.h.b16 %v194
      %v298 = vunpack.c.l.b16 %v195
      %v299 = vunpack.c.h.b16 %v195
      %v300 = vunpack.c.l.b16 %v196
      %v301 = vunpack.c.h.b16 %v196
      %v302 = vunpack.c.l.b16 %v197
      %v303 = vunpack.c.h.b16 %v197
      %v304 = vunpack.c.l.b16 %v198
      %v305 = vunpack.c.h.b16 %v198
      %v306 = vunpack.c.l.b16 %v199
      %v307 = vunpack.c.h.b16 %v199
      %v308 = vunpack.c.l.b16 %v200
      %v309 = vunpack.c.h.b16 %v200
      %v310 = vunpack.c.l.b16 %v201
      %v311 = vunpack.c.h.b16 %v201
      %v312 = vunpack.c.l.b16 %v202
      %v313 = vunpack.c.h.b16 %v202
      %v314 = vunpack.c.l.b16 %v203
      %v315 = vunpack.c.h.b16 %v203
      %v316 = vunpack.c.l.b16 %v204
      %v317 = vunpack.c.h.b16 %v204
      %v318 = vunpack.c.l.b16 %v205
      %v319 = vunpack.c.h.b16 %v205
      %v320 = vunpack.c.l.b16 %v206
      %v321 = vunpack.c.h.b16 %v206
      %v322 = vunpack.c.l.b16 %v207
      %v323 = vunpack.c.h.b16 %v207
      %v324 = vunpack.c.l.b16 %v208
      %v325 = vunpack.c.h.b16 %v208
      %v326 = vunpack.c.l.b16 %v209
      %v327 = vunpack.c.h.b16 %v209
      %v328 = vunpack.c.l.b16 %v210
      %v329 = vunpack.c.h.b16 %v210
      %v330 = vunpack.c.l.b16 %v211
      %v331 = vunpack.c.h.b16 %v211
      %v332 = vunpack.c.l.b16 %v212
      %v333 = vunpack.c.h.b16 %v212
      %v334 = vunpack.c.l.b16 %v213
      %v335 = vunpack.c.h.b16 %v213
      %v336 = vunpack.c.l.b16 %v214
      %v337 = vunpack.c.h.b16 %v214
      %v338 = vunpack.c.l.b16 %v215
      %v339 = vunpack.c.h.b16 %v215
      %v340 = vunpack.c.l.b16 %v216
      %v341 = vunpack.c.h.b16 %v216
      %v342 = vunpack.c.l.b16 %v217
      %v343 = vunpack.c.h.b16 %v217
      %v344 = vunpack.c.l.b16 %v218
      %v345 = vunpack.c.h.b16 %v218
      %v346 = vunpack.c.l.b16 %v219
      %v347 = vunpack.c.h.b16 %v219
      %v348 = vpack.c.b16 %v286, %v284
      %v349 = vpack.c.b16 %v287, %v285
      %v350 = vpack.c.b16 %v290, %v288
      %v351 = vpack.c.b16 %v291, %v289
      %v352 = vpack.c.b16 %v294, %v292
      %v353 = vpack.c.b16 %v295, %v293
      %v354 = vpack.c.b16 %v298, %v296
      %v355 = vpack.c.b16 %v299, %v297
      %v356 = vpack.c.b16 %v302, %v300
      %v357 = vpack.c.b16 %v303, %v301
      %v358 = vpack.c.b16 %v306, %v304
      %v359 = vpack.c.b16 %v307, %v305
      %v360 = vpack.c.b16 %v310, %v308
      %v361 = vpack.c.b16 %v311, %v309
      %v362 = vpack.c.b16 %v314, %v312
      %v363 = vpack.c.b16 %v315, %v313
      %v364 = vpack.c.b16 %v318, %v316
      %v365 = vpack.c.b16 %v319, %v317
      %v366 = vpack.c.b16 %v322, %v320
      %v367 = vpack.c.b16 %v323, %v321
      %v368 = vpack.c.b16 %v326, %v324
      %v369 = vpack.c.b16 %v327, %v325
      %v370 = vpack.c.b16 %v330, %v328
      %v371 = vpack.c.b16 %v331, %v329
      %v372 = vpack.c.b16 %v334, %v332
      %v373 = vpack.c.b16 %v335, %v333
      %v374 = vpack.c.b16 %v338, %v336
      %v375 = vpack.c.b16 %v339, %v337
      %v376 = vpack.c.b16 %v342, %v340
      %v377 = vpack.c.b16 %v343, %v341
      %v378 = vpack.c.b16 %v346, %v344
      %v379 = vpack.c.b16 %v347, %v345
      %v444 = vunpack.c.l.b16 %v220
      %v445 = vunpack.c.l.b16 %v221
      %v446 = vunpack.c.l.b16 %v222
      %v447 = vunpack.c.l.b16 %v223
      %v448 = vunpack.c.l.b16 %v224
      %v449 = vunpack.c.l.b16 %v225
      %v450 = vunpack.c.l.b16 %v226
      %v451 = vunpack.c.l.b16 %v227
      %v452 = vunpack.c.l.b16 %v228
      %v453 = vunpack.c.l.b16 %v229
      %v454 = vunpack.c.l.b16 %v230
      %v455 = vunpack.c.l.b16 %v231
      %v456 = vunpack.c.l.b16 %v232
      %v457 = vunpack.c.l.b16 %v233
      %v458 = vunpack.c.l.b16 %v234
      %v459 = vunpack.c.l.b16 %v235
      %v460 = vunpack.c.l.b16 %v236
      %v461 = vunpack.c.l.b16 %v237
      %v462 = vunpack.c.l.b16 %v238
      %v463 = vunpack.c.l.b16 %v239
      %v464 = vunpack.c.l.b16 %v240
      %v465 = vunpack.c.l.b16 %v241
      %v466 = vunpack.c.l.b16 %v242
      %v467 = vunpack.c.l.b16 %v243
      %v468 = vunpack.c.l.b16 %v244
      %v469 = vunpack.c.l.b16 %v245
      %v470 = vunpack.c.l.b16 %v246
      %v471 = vunpack.c.l.b16 %v247
      %v472 = vunpack.c.l.b16 %v248
      %v473 = vunpack.c.l.b16 %v249
      %v474 = vunpack.c.l.b16 %v250
      %v475 = vunpack.c.l.b16 %v251
      %v476 = vpack.c.b16 %v445, %v444
      %v477 = vpack.c.b16 %v447, %v446
      %v478 = vpack.c.b16 %v449, %v448
      %v479 = vpack.c.b16 %v451, %v450
      %v480 = vpack.c.b16 %v453, %v452
      %v481 = vpack.c.b16 %v455, %v454
      %v482 = vpack.c.b16 %v457, %v456
      %v483 = vpack.c.b16 %v459, %v458
      %v484 = vpack.c.b16 %v461, %v460
      %v485 = vpack.c.b16 %v463, %v462
      %v486 = vpack.c.b16 %v465, %v464
      %v487 = vpack.c.b16 %v467, %v466
      %v488 = vpack.c.b16 %v469, %v468
      %v489 = vpack.c.b16 %v471, %v470
      %v490 = vpack.c.b16 %v473, %v472
      %v491 = vpack.c.b16 %v475, %v474
      %508 = vmatpush.bf16.msra.mxu0 %v483
      %509 = vmatpush.bf16.msra.mxu0 %v482
      %510 = vmatpush.bf16.msra.mxu0 %v481
      %511 = vmatpush.bf16.msra.mxu0 %v480
      %512 = vmatpush.bf16.msra.mxu0 %v479
      %513 = vmatpush.bf16.msra.mxu0 %v478
      %514 = vmatpush.bf16.msra.mxu0 %v477
      %515 = vmatpush.bf16.msra.mxu0 %v476
      %516 = vmatmul.bf16.gmra.mxu0 %v348
      %v517 = vpop.f32.mrf.mxu0
      %v518 = vadd.f32 0.0, %v517
      %v519 = vpop.f32.mrf.mxu0
      %v520 = vadd.f32 0.0, %v519
      %521 = vmatmul.bf16.gmra.mxu0 %v350
      %v522 = vpop.f32.mrf.mxu0
      %v523 = vadd.f32 0.0, %v522
      %v524 = vpop.f32.mrf.mxu0
      %v525 = vadd.f32 0.0, %v524
      %526 = vmatmul.bf16.gmra.mxu0 %v352
      %v527 = vpop.f32.mrf.mxu0
      %v528 = vadd.f32 0.0, %v527
      %v529 = vpop.f32.mrf.mxu0
      %v530 = vadd.f32 0.0, %v529
      %531 = vmatmul.bf16.gmra.mxu0 %v354
      %v532 = vpop.f32.mrf.mxu0
      %v533 = vadd.f32 0.0, %v532
      %v534 = vpop.f32.mrf.mxu0
      %v535 = vadd.f32 0.0, %v534
      %536 = vmatmul.bf16.gmra.mxu0 %v356
      %v537 = vpop.f32.mrf.mxu0
      %v538 = vadd.f32 0.0, %v537
      %v539 = vpop.f32.mrf.mxu0
      %v540 = vadd.f32 0.0, %v539
      %541 = vmatmul.bf16.gmra.mxu0 %v358
      %v542 = vpop.f32.mrf.mxu0
      %v543 = vadd.f32 0.0, %v542
      %v544 = vpop.f32.mrf.mxu0
      %v545 = vadd.f32 0.0, %v544
      %546 = vmatmul.bf16.gmra.mxu0 %v360
      %v547 = vpop.f32.mrf.mxu0
      %v548 = vadd.f32 0.0, %v547
      %v549 = vpop.f32.mrf.mxu0
      %v550 = vadd.f32 0.0, %v549
      %551 = vmatmul.bf16.gmra.mxu0 %v362
      %v552 = vpop.f32.mrf.mxu0
      %v553 = vadd.f32 0.0, %v552
      %v554 = vpop.f32.mrf.mxu0
      %v555 = vadd.f32 0.0, %v554
      %556 = vmatmul.bf16.gmra.mxu0 %v364
      %v557 = vpop.f32.mrf.mxu0
      %v558 = vadd.f32 0.0, %v557
      %v559 = vpop.f32.mrf.mxu0
      %v560 = vadd.f32 0.0, %v559
      %561 = vmatmul.bf16.gmra.mxu0 %v366
      %v562 = vpop.f32.mrf.mxu0
      %v563 = vadd.f32 0.0, %v562
      %v564 = vpop.f32.mrf.mxu0
      %v565 = vadd.f32 0.0, %v564
      %566 = vmatmul.bf16.gmra.mxu0 %v368
      %v567 = vpop.f32.mrf.mxu0
      %v568 = vadd.f32 0.0, %v567
      %v569 = vpop.f32.mrf.mxu0
      %v570 = vadd.f32 0.0, %v569
      %571 = vmatmul.bf16.gmra.mxu0 %v370
      %v572 = vpop.f32.mrf.mxu0
      %v573 = vadd.f32 0.0, %v572
      %v574 = vpop.f32.mrf.mxu0
      %v575 = vadd.f32 0.0, %v574
      %576 = vmatmul.bf16.gmra.mxu0 %v372
      %v577 = vpop.f32.mrf.mxu0
      %v578 = vadd.f32 0.0, %v577
      %v579 = vpop.f32.mrf.mxu0
      %v580 = vadd.f32 0.0, %v579
      %581 = vmatmul.bf16.gmra.mxu0 %v374
      %v582 = vpop.f32.mrf.mxu0
      %v583 = vadd.f32 0.0, %v582
      %v584 = vpop.f32.mrf.mxu0
      %v585 = vadd.f32 0.0, %v584
      %586 = vmatmul.bf16.gmra.mxu0 %v376
      %v587 = vpop.f32.mrf.mxu0
      %v588 = vadd.f32 0.0, %v587
      %v589 = vpop.f32.mrf.mxu0
      %v590 = vadd.f32 0.0, %v589
      %591 = vmatmul.bf16.gmra.mxu0 %v378
      %v592 = vpop.f32.mrf.mxu0
      %v593 = vadd.f32 0.0, %v592
      %v594 = vpop.f32.mrf.mxu0
      %v595 = vadd.f32 0.0, %v594
      %596 = vdwg.mxu0
      %597 = vmatpush.bf16.msra.mxu0 %v491
      %598 = vmatpush.bf16.msra.mxu0 %v490
      %599 = vmatpush.bf16.msra.mxu0 %v489
      %600 = vmatpush.bf16.msra.mxu0 %v488
      %601 = vmatpush.bf16.msra.mxu0 %v487
      %602 = vmatpush.bf16.msra.mxu0 %v486
      %603 = vmatpush.bf16.msra.mxu0 %v485
      %604 = vmatpush.bf16.msra.mxu0 %v484
      %605 = vmatmul.bf16.gmra.mxu0 %v349
      %v606 = vpop.f32.mrf.mxu0
      %v607 = vadd.f32 %v518, %v606
      %v608 = vpop.f32.mrf.mxu0
      %v609 = vadd.f32 %v520, %v608
      %610 = vmatmul.bf16.gmra.mxu0 %v351
      %v611 = vpop.f32.mrf.mxu0
      %v612 = vadd.f32 %v523, %v611
      %v613 = vpop.f32.mrf.mxu0
      %v614 = vadd.f32 %v525, %v613
      %615 = vmatmul.bf16.gmra.mxu0 %v353
      %v616 = vpop.f32.mrf.mxu0
      %v617 = vadd.f32 %v528, %v616
      %v618 = vpop.f32.mrf.mxu0
      %v619 = vadd.f32 %v530, %v618
      %620 = vmatmul.bf16.gmra.mxu0 %v355
      %v621 = vpop.f32.mrf.mxu0
      %v622 = vadd.f32 %v533, %v621
      %v623 = vpop.f32.mrf.mxu0
      %v624 = vadd.f32 %v535, %v623
      %625 = vmatmul.bf16.gmra.mxu0 %v357
      %v626 = vpop.f32.mrf.mxu0
      %v627 = vadd.f32 %v538, %v626
      %v628 = vpop.f32.mrf.mxu0
      %v629 = vadd.f32 %v540, %v628
      %630 = vmatmul.bf16.gmra.mxu0 %v359
      %v631 = vpop.f32.mrf.mxu0
      %v632 = vadd.f32 %v543, %v631
      %v633 = vpop.f32.mrf.mxu0
      %v634 = vadd.f32 %v545, %v633
      %635 = vmatmul.bf16.gmra.mxu0 %v361
      %v636 = vpop.f32.mrf.mxu0
      %v637 = vadd.f32 %v548, %v636
      %v638 = vpop.f32.mrf.mxu0
      %v639 = vadd.f32 %v550, %v638
      %640 = vmatmul.bf16.gmra.mxu0 %v363
      %v641 = vpop.f32.mrf.mxu0
      %v642 = vadd.f32 %v553, %v641
      %v643 = vpop.f32.mrf.mxu0
      %v644 = vadd.f32 %v555, %v643
      %645 = vmatmul.bf16.gmra.mxu0 %v365
      %v646 = vpop.f32.mrf.mxu0
      %v647 = vadd.f32 %v558, %v646
      %v648 = vpop.f32.mrf.mxu0
      %v649 = vadd.f32 %v560, %v648
      %650 = vmatmul.bf16.gmra.mxu0 %v367
      %v651 = vpop.f32.mrf.mxu0
      %v652 = vadd.f32 %v563, %v651
      %v653 = vpop.f32.mrf.mxu0
      %v654 = vadd.f32 %v565, %v653
      %655 = vmatmul.bf16.gmra.mxu0 %v369
      %v656 = vpop.f32.mrf.mxu0
      %v657 = vadd.f32 %v568, %v656
      %v658 = vpop.f32.mrf.mxu0
      %v659 = vadd.f32 %v570, %v658
      %660 = vmatmul.bf16.gmra.mxu0 %v371
      %v661 = vpop.f32.mrf.mxu0
      %v662 = vadd.f32 %v573, %v661
      %v663 = vpop.f32.mrf.mxu0
      %v664 = vadd.f32 %v575, %v663
      %665 = vmatmul.bf16.gmra.mxu0 %v373
      %v666 = vpop.f32.mrf.mxu0
      %v667 = vadd.f32 %v578, %v666
      %v668 = vpop.f32.mrf.mxu0
      %v669 = vadd.f32 %v580, %v668
      %670 = vmatmul.bf16.gmra.mxu0 %v375
      %v671 = vpop.f32.mrf.mxu0
      %v672 = vadd.f32 %v583, %v671
      %v673 = vpop.f32.mrf.mxu0
      %v674 = vadd.f32 %v585, %v673
      %675 = vmatmul.bf16.gmra.mxu0 %v377
      %v676 = vpop.f32.mrf.mxu0
      %v677 = vadd.f32 %v588, %v676
      %v678 = vpop.f32.mrf.mxu0
      %v679 = vadd.f32 %v590, %v678
      %680 = vmatmul.bf16.gmra.mxu0 %v379
      %v681 = vpop.f32.mrf.mxu0
      %v682 = vadd.f32 %v593, %v681
      %v683 = vpop.f32.mrf.mxu0
      %v684 = vadd.f32 %v595, %v683
      %685 = vdwg.mxu0
      %v686 = vpack.c.bf16 %v607, %v607
      %v687 = vpack.c.bf16 %v609, %v609
      %v688 = vpack.c.bf16 %v612, %v612
      %v689 = vpack.c.bf16 %v614, %v614
      %v690 = vpack.c.bf16 %v617, %v617
      %v691 = vpack.c.bf16 %v619, %v619
      %v692 = vpack.c.bf16 %v622, %v622
      %v693 = vpack.c.bf16 %v624, %v624
      %v694 = vpack.c.bf16 %v627, %v627
      %v695 = vpack.c.bf16 %v629, %v629
      %v696 = vpack.c.bf16 %v632, %v632
      %v697 = vpack.c.bf16 %v634, %v634
      %v698 = vpack.c.bf16 %v637, %v637
      %v699 = vpack.c.bf16 %v639, %v639
      %v700 = vpack.c.bf16 %v642, %v642
      %v701 = vpack.c.bf16 %v644, %v644
      %v702 = vpack.c.bf16 %v647, %v647
      %v703 = vpack.c.bf16 %v649, %v649
      %v704 = vpack.c.bf16 %v652, %v652
      %v705 = vpack.c.bf16 %v654, %v654
      %v706 = vpack.c.bf16 %v657, %v657
      %v707 = vpack.c.bf16 %v659, %v659
      %v708 = vpack.c.bf16 %v662, %v662
      %v709 = vpack.c.bf16 %v664, %v664
      %v710 = vpack.c.bf16 %v667, %v667
      %v711 = vpack.c.bf16 %v669, %v669
      %v712 = vpack.c.bf16 %v672, %v672
      %v713 = vpack.c.bf16 %v674, %v674
      %v714 = vpack.c.bf16 %v677, %v677
      %v715 = vpack.c.bf16 %v679, %v679
      %v716 = vpack.c.bf16 %v682, %v682
      %v717 = vpack.c.bf16 %v684, %v684
      %718 = vst [vmem:[%s182] sm:$0xf] %v686
      %719 = vst [vmem:[%s182 + $0x4] sm:$0xf] %v687
      %720 = vst [vmem:[%s182 + $0x8] sm:$0xf] %v688
      %721 = vst [vmem:[%s182 + $0xc] sm:$0xf] %v689
      %722 = vst [vmem:[%s182 + $0x10] sm:$0xf] %v690
      %723 = vst [vmem:[%s182 + $0x14] sm:$0xf] %v691
      %724 = vst [vmem:[%s182 + $0x18] sm:$0xf] %v692
      %725 = vst [vmem:[%s182 + $0x1c] sm:$0xf] %v693
      %726 = vst [vmem:[%s182 + $0x20] sm:$0xf] %v694
      %727 = vst [vmem:[%s182 + $0x24] sm:$0xf] %v695
      %728 = vst [vmem:[%s182 + $0x28] sm:$0xf] %v696
      %729 = vst [vmem:[%s182 + $0x2c] sm:$0xf] %v697
      %730 = vst [vmem:[%s182 + $0x30] sm:$0xf] %v698
      %731 = vst [vmem:[%s182 + $0x34] sm:$0xf] %v699
      %732 = vst [vmem:[%s182 + $0x38] sm:$0xf] %v700
      %733 = vst [vmem:[%s182 + $0x3c] sm:$0xf] %v701
      %734 = vst [vmem:[%s182 + $0x40] sm:$0xf] %v702
      %735 = vst [vmem:[%s182 + $0x44] sm:$0xf] %v703
      %736 = vst [vmem:[%s182 + $0x48] sm:$0xf] %v704
      %737 = vst [vmem:[%s182 + $0x4c] sm:$0xf] %v705
      %738 = vst [vmem:[%s182 + $0x50] sm:$0xf] %v706
      %739 = vst [vmem:[%s182 + $0x54] sm:$0xf] %v707
      %740 = vst [vmem:[%s182 + $0x58] sm:$0xf] %v708
      %741 = vst [vmem:[%s182 + $0x5c] sm:$0xf] %v709
      %742 = vst [vmem:[%s182 + $0x60] sm:$0xf] %v710
      %743 = vst [vmem:[%s182 + $0x64] sm:$0xf] %v711
      %744 = vst [vmem:[%s182 + $0x68] sm:$0xf] %v712
      %745 = vst [vmem:[%s182 + $0x6c] sm:$0xf] %v713
      %746 = vst [vmem:[%s182 + $0x70] sm:$0xf] %v714
      %747 = vst [vmem:[%s182 + $0x74] sm:$0xf] %v715
      %748 = vst [vmem:[%s182 + $0x78] sm:$0xf] %v716
      %749 = vst [vmem:[%s182 + $0x7c] sm:$0xf] %v717
      %v750 = vadd.f32 %v607, %v609
      %v751 = vadd.f32 %v750, %v612
      %v752 = vadd.f32 %v751, %v614
      %v753 = vadd.f32 %v752, %v617
      %v754 = vadd.f32 %v753, %v619
      %v755 = vadd.f32 %v754, %v622
      %v756 = vadd.f32 %v755, %v624
      %v757 = vadd.f32 %v756, %v627
      %v758 = vadd.f32 %v757, %v629
      %v759 = vadd.f32 %v758, %v632
      %v760 = vadd.f32 %v759, %v634
      %v761 = vadd.f32 %v760, %v637
      %v762 = vadd.f32 %v761, %v639
      %v763 = vadd.f32 %v762, %v642
      %v764 = vadd.f32 %v763, %v644
      %v765 = vadd.f32 %v764, %v647
      %v766 = vadd.f32 %v765, %v649
      %v767 = vadd.f32 %v766, %v652
      %v768 = vadd.f32 %v767, %v654
      %v769 = vadd.f32 %v768, %v657
      %v770 = vadd.f32 %v769, %v659
      %v771 = vadd.f32 %v770, %v662
      %v772 = vadd.f32 %v771, %v664
      %v773 = vadd.f32 %v772, %v667
      %v774 = vadd.f32 %v773, %v669
      %v775 = vadd.f32 %v774, %v672
      %v776 = vadd.f32 %v775, %v674
      %v777 = vadd.f32 %v776, %v677
      %v778 = vadd.f32 %v777, %v679
      %v779 = vadd.f32 %v778, %v682
      %v780 = vadd.f32 %v779, %v684
      %v781 = vrot.slane %v780, 4
      %v782 = vadd.f32 %v780, %v781
      %v783 = vrot.slane %v782, 2
      %v784 = vadd.f32 %v782, %v783
      %v785 = vrot.slane %v784, 1
      %v786 = vadd.f32 %v784, %v785
      %v787 = vmul.f32 %v607, %v607
      %v788 = vmul.f32 %v609, %v609
      %v789 = vmul.f32 %v612, %v612
      %v790 = vmul.f32 %v614, %v614
      %v791 = vmul.f32 %v617, %v617
      %v792 = vmul.f32 %v619, %v619
      %v793 = vmul.f32 %v622, %v622
      %v794 = vmul.f32 %v624, %v624
      %v795 = vmul.f32 %v627, %v627
      %v796 = vmul.f32 %v629, %v629
      %v797 = vmul.f32 %v632, %v632
      %v798 = vmul.f32 %v634, %v634
      %v799 = vmul.f32 %v637, %v637
      %v800 = vmul.f32 %v639, %v639
      %v801 = vmul.f32 %v642, %v642
      %v802 = vmul.f32 %v644, %v644
      %v803 = vmul.f32 %v647, %v647
      %v804 = vmul.f32 %v649, %v649
      %v805 = vmul.f32 %v652, %v652
      %v806 = vmul.f32 %v654, %v654
      %v807 = vmul.f32 %v657, %v657
      %v808 = vmul.f32 %v659, %v659
      %v809 = vmul.f32 %v662, %v662
      %v810 = vmul.f32 %v664, %v664
      %v811 = vmul.f32 %v667, %v667
      %v812 = vmul.f32 %v669, %v669
      %v813 = vmul.f32 %v672, %v672
      %v814 = vmul.f32 %v674, %v674
      %v815 = vmul.f32 %v677, %v677
      %v816 = vmul.f32 %v679, %v679
      %v817 = vmul.f32 %v682, %v682
      %v818 = vmul.f32 %v684, %v684
      %v819 = vadd.f32 %v787, %v788
      %v820 = vadd.f32 %v819, %v789
      %v821 = vadd.f32 %v820, %v790
      %v822 = vadd.f32 %v821, %v791
      %v823 = vadd.f32 %v822, %v792
      %v824 = vadd.f32 %v823, %v793
      %v825 = vadd.f32 %v824, %v794
      %v826 = vadd.f32 %v825, %v795
      %v827 = vadd.f32 %v826, %v796
      %v828 = vadd.f32 %v827, %v797
      %v829 = vadd.f32 %v828, %v798
      %v830 = vadd.f32 %v829, %v799
      %v831 = vadd.f32 %v830, %v800
      %v832 = vadd.f32 %v831, %v801
      %v833 = vadd.f32 %v832, %v802
      %v834 = vadd.f32 %v833, %v803
      %v835 = vadd.f32 %v834, %v804
      %v836 = vadd.f32 %v835, %v805
      %v837 = vadd.f32 %v836, %v806
      %v838 = vadd.f32 %v837, %v807
      %v839 = vadd.f32 %v838, %v808
      %v840 = vadd.f32 %v839, %v809
      %v841 = vadd.f32 %v840, %v810
      %v842 = vadd.f32 %v841, %v811
      %v843 = vadd.f32 %v842, %v812
      %v844 = vadd.f32 %v843, %v813
      %v845 = vadd.f32 %v844, %v814
      %v846 = vadd.f32 %v845, %v815
      %v847 = vadd.f32 %v846, %v816
      %v848 = vadd.f32 %v847, %v817
      %v849 = vadd.f32 %v848, %v818
      %v850 = vrot.slane %v849, 4
      %v851 = vadd.f32 %v849, %v850
      %v852 = vrot.slane %v851, 2
      %v853 = vadd.f32 %v851, %v852
      %v854 = vrot.slane %v853, 1
      %v855 = vadd.f32 %v853, %v854
      %vm856 = vcmask 1040384
      %v857 = vsel %vm856, %v786, %v855
      %858 = vst [vmem:[%s187] sm:$0x3] %v857
      %s859 = smul.u32 32, %s15
      %p860 = scmp.lt.s32.totalorder %s859, 63
      %s861 = scalar_select %p860, %s859, 63
      %s862 = smul.addr %s861, 4
      %s863 = scalar_lea.vmem %s2, %s862
      %p864 = scmp.lt.s32.totalorder %s15, 1
      %s865 = scalar_select %p864, %s15, 1
      %s866 = smul.addr %s865, 2
      %s867 = scalar_lea.vmem %s3, %s866
      // Predicated region
      $region29: #{basicblock_forward.4} parent=27 // pred_check
        %p868 = pneg %p80
      $region30: #{basicblock_forward.4} parent=27 // pred_check_branch
        %870 = sbr.rel (%p868) target = $region32
      $region31: #{basicblock_forward.4} parent=27 // pred_region
        %s871 = smul.u32 32, %s15
      $region32: #{basicblock_forward.4} parent=27 // pred_fallthru
        _
      // Predicated region
      $region33: #{basicblock_forward.4} parent=27 // pred_check
        %p872 = pneg %p106
      $region34: #{basicblock_forward.4} parent=27 // pred_check_branch
        %874 = sbr.rel (%p872) target = $region36
      $region35: #{basicblock_forward.4} parent=27 // pred_region
        _
      $region36: #{basicblock_forward.4} parent=27 // pred_fallthru
        _
    $region28: #{basicblock_forward.4} parent=5 // pred_fallthru
      _
    %p875 = scmp.le.s32.totalorder 2, %s10
    // Predicated region
    $region37: #{basicblock_forward.4} parent=5 // pred_check
      %p876 = pneg %p875
    $region38: #{basicblock_forward.4} parent=5 // pred_check_branch
      %878 = sbr.rel (%p876) target = $region40
    $region39: #{basicblock_forward.4} parent=5 // pred_region
      %s879 = ssub.s32 %s10, 2
      // Predicated region
      $region41: #{basicblock_forward.4} parent=39 // pred_check
        %p880 = pneg %p86
      $region42: #{basicblock_forward.4} parent=39 // pred_check_branch
        %882 = sbr.rel (%p880) target = $region44
      $region43: #{basicblock_forward.4} parent=39 // pred_region
        %s883 = smul.u32 32, %s16
        %p884 = scmp.lt.s32.totalorder %s883, 63
        %s885 = scalar_select %p884, %s883, 63
        %s886 = smul.addr %s885, 4
        %s887 = scalar_lea.vmem %s2, %s886
      $region44: #{basicblock_forward.4} parent=39 // pred_fallthru
        _
      // Predicated region
      $region45: #{basicblock_forward.4} parent=39 // pred_check
        %p888 = pneg %p112
      $region46: #{basicblock_forward.4} parent=39 // pred_check_branch
        %890 = sbr.rel (%p888) target = $region48
      $region47: #{basicblock_forward.4} parent=39 // pred_region
        %p891 = scmp.lt.s32.totalorder %s16, 1
        %s892 = scalar_select %p891, %s16, 1
        %s893 = smul.addr %s892, 2
        %s894 = scalar_lea.vmem %s3, %s893
      $region48: #{basicblock_forward.4} parent=39 // pred_fallthru
        _
    $region40: #{basicblock_forward.4} parent=5 // pred_fallthru
      _
  $region6: #{basicblock_forward.4} parent=0 // loop_footer
    %s14 = sadd.s32 1, %s10
  $region7: #{basicblock_forward.4} parent=0 // loop_footer_branch
    %9 = sbr.rel target = $region3
  $region8: #{basicblock_forward.4} parent=0 // loop_exit
    _

// kernel: basicblock_forward.5
$region0: #{basicblock_forward.5}
  #allocation0 [shape = 'u32[]', space=smem, size = 0x4, offset = 0x4, fixed_abs, tag = 'smem constant byte address 0x4 - core index']
  #allocation1 [shape = 'u32[72,128]{1,0:T(1,128)}', space=vmem, size = 0x9000, scoped, tag = 'internal scratch']
  %s0 = inlined_call_operand.vmem [shape: bf16[512,128], index: 0, kind: input, shape index: {}]
  %s1 = inlined_call_operand.vmem [shape: f32[1,128], index: 1, kind: input, shape index: {}]
  %s2 = inlined_call_operand.vmem [shape: f32[1,128], index: 2, kind: input, shape index: {}]
  %s3 = inlined_call_operand.vmem [shape: bf16[512,128], index: 3, kind: output, shape index: {}]
  %s4 = sld [smem:[#allocation0]]
  $region45: #{basicblock_forward.5} parent=0
    _
  %s6 = ssub.s32 1, %s4
  %s7 = scalar_select 0, %s6, %s4
  loop: start=0, step=1, limit=4
  $region2: #{basicblock_forward.5} parent=0 // loop_pre_header
    _
  $region3: #{basicblock_forward.5} parent=0 // loop_header
    %s9 = sphi 0, %s13
    %p10 = scmp.ge.s32.totalorder %s9, 4
    %s19 = sphi 0, %s21
    %s22 = sphi 0, %s19
    %s23 = sphi 0, %s22
    %s39 = sphi 0, %s23
    %s43 = sphi 0, %s43
    %s45 = sphi 0, %s43
    %s46 = sphi 0, %s45
    %s60 = sphi 0, %s46
    %s64 = sphi 0, %s64
    %s66 = sphi 0, %s64
    %s67 = sphi 0, %s66
    %s81 = sphi 0, %s67
    %s87 = sphi 0, %s89
    %s90 = sphi 0, %s87
    %s91 = sphi 0, %s90
    %s107 = sphi 0, %s91
  $region4: #{basicblock_forward.5} parent=0 // loop_header_branch
    %12 = sbr.rel (%p10) target = $region8
  $region5: #{basicblock_forward.5} parent=0 // loop_body
    %s14 = ssub.s32 %s9, 1
    %s15 = ssub.s32 %s9, 2
    %s16 = sadd.s32 %s9, 1
    %s17 = ssub.s32 %s9, %s16
    %p18 = scmp.eq.s32.totalorder %s17, 0
    %s20 = sadd.s32 %s19, 1
    %s21 = scalar_select %p18, %s19, %s20
    %p24 = pneg %p18
    %p25 = scmp.eq.s32.totalorder %s9, 1
    %p26 = por %p24, %p25
    %p27 = scmp.ne.s32.totalorder %s19, %s22
    %p28 = scmp.eq.s32.totalorder %s9, 0
    %p29 = por %p27, %p28
    %p30 = scmp.ne.s32.totalorder %s19, %s22
    %p31 = scmp.eq.s32.totalorder %s14, 1
    %p32 = por %p30, %p31
    %p33 = scmp.ne.s32.totalorder %s22, %s23
    %p34 = scmp.eq.s32.totalorder %s14, 0
    %p35 = por %p33, %p34
    %p36 = scmp.ne.s32.totalorder %s22, %s23
    %p37 = scmp.eq.s32.totalorder %s15, 1
    %p38 = por %p36, %p37
    %p40 = scmp.ne.s32.totalorder %s23, %s39
    %p41 = scmp.eq.s32.totalorder %s15, 0
    %p42 = por %p40, %p41
    %s44 = sadd.s32 %s43, 1
    %p47 = scmp.eq.s32.totalorder %s9, 1
    %p48 = scmp.ne.s32.totalorder %s43, %s45
    %p49 = scmp.eq.s32.totalorder %s9, 0
    %p50 = por %p48, %p49
    %p51 = scmp.ne.s32.totalorder %s43, %s45
    %p52 = scmp.eq.s32.totalorder %s14, 1
    %p53 = por %p51, %p52
    %p54 = scmp.ne.s32.totalorder %s45, %s46
    %p55 = scmp.eq.s32.totalorder %s14, 0
    %p56 = por %p54, %p55
    %p57 = scmp.ne.s32.totalorder %s45, %s46
    %p58 = scmp.eq.s32.totalorder %s15, 1
    %p59 = por %p57, %p58
    %p61 = scmp.ne.s32.totalorder %s46, %s60
    %p62 = scmp.eq.s32.totalorder %s15, 0
    %p63 = por %p61, %p62
    %s65 = sadd.s32 %s64, 1
    %p68 = scmp.eq.s32.totalorder %s9, 1
    %p69 = scmp.ne.s32.totalorder %s64, %s66
    %p70 = scmp.eq.s32.totalorder %s9, 0
    %p71 = por %p69, %p70
    %p72 = scmp.ne.s32.totalorder %s64, %s66
    %p73 = scmp.eq.s32.totalorder %s14, 1
    %p74 = por %p72, %p73
    %p75 = scmp.ne.s32.totalorder %s66, %s67
    %p76 = scmp.eq.s32.totalorder %s14, 0
    %p77 = por %p75, %p76
    %p78 = scmp.ne.s32.totalorder %s66, %s67
    %p79 = scmp.eq.s32.totalorder %s15, 1
    %p80 = por %p78, %p79
    %p82 = scmp.ne.s32.totalorder %s67, %s81
    %p83 = scmp.eq.s32.totalorder %s15, 0
    %p84 = por %p82, %p83
    %s85 = ssub.s32 %s9, %s16
    %p86 = scmp.eq.s32.totalorder %s85, 0
    %s88 = sadd.s32 %s87, 1
    %s89 = scalar_select %p86, %s87, %s88
    %p92 = pneg %p86
    %p93 = scmp.eq.s32.totalorder %s9, 1
    %p94 = por %p92, %p93
    %p95 = scmp.ne.s32.totalorder %s87, %s90
    %p96 = scmp.eq.s32.totalorder %s9, 0
    %p97 = por %p95, %p96
    %p98 = scmp.ne.s32.totalorder %s87, %s90
    %p99 = scmp.eq.s32.totalorder %s14, 1
    %p100 = por %p98, %p99
    %p101 = scmp.ne.s32.totalorder %s90, %s91
    %p102 = scmp.eq.s32.totalorder %s14, 0
    %p103 = por %p101, %p102
    %p104 = scmp.ne.s32.totalorder %s90, %s91
    %p105 = scmp.eq.s32.totalorder %s15, 1
    %p106 = por %p104, %p105
    %p108 = scmp.ne.s32.totalorder %s91, %s107
    %p109 = scmp.eq.s32.totalorder %s15, 0
    %p110 = por %p108, %p109
    %p111 = scmp.le.s32.totalorder 1, %s9
    %p112 = scmp.lt.s32.totalorder %s9, 3
    %p113 = pnand %p111, %p112
    %p114 = pneg %p113
    // Predicated region
    $region9: #{basicblock_forward.5} parent=5 // pred_check
      _
    $region10: #{basicblock_forward.5} parent=5 // pred_check_branch
      %116 = sbr.rel (%p113) target = $region12
    $region11: #{basicblock_forward.5} parent=5 // pred_region
      %s117 = ssub.s32 %s9, 1
      // Predicated region
      $region13: #{basicblock_forward.5} parent=11 // pred_check
        %p118 = pneg %p56
      $region14: #{basicblock_forward.5} parent=11 // pred_check_branch
        %120 = sbr.rel (%p118) target = $region16
      $region15: #{basicblock_forward.5} parent=11 // pred_region
        _
      $region16: #{basicblock_forward.5} parent=11 // pred_fallthru
        _
      // Predicated region
      $region17: #{basicblock_forward.5} parent=11 // pred_check
        %p121 = pneg %p77
      $region18: #{basicblock_forward.5} parent=11 // pred_check_branch
        %123 = sbr.rel (%p121) target = $region20
      $region19: #{basicblock_forward.5} parent=11 // pred_region
        _
      $region20: #{basicblock_forward.5} parent=11 // pred_fallthru
        _
    $region12: #{basicblock_forward.5} parent=5 // pred_fallthru
      _
    %p124 = scmp.lt.s32.totalorder %s9, 2
    // Predicated region
    $region21: #{basicblock_forward.5} parent=5 // pred_check
      %p125 = pneg %p124
    $region22: #{basicblock_forward.5} parent=5 // pred_check_branch
      %127 = sbr.rel (%p125) target = $region24
    $region23: #{basicblock_forward.5} parent=5 // pred_region
      // Predicated region
      $region25: #{basicblock_forward.5} parent=23 // pred_check
        %p128 = pneg %p29
      $region26: #{basicblock_forward.5} parent=23 // pred_check_branch
        %130 = sbr.rel (%p128) target = $region28
      $region27: #{basicblock_forward.5} parent=23 // pred_region
        %s131 = smul.u32 32, %s9
        %p132 = scmp.lt.s32.totalorder %s131, 63
        %s133 = scalar_select %p132, %s131, 63
        %s134 = smul.addr %s133, 4
        %s135 = scalar_lea.vmem %s0, %s134
        %s136 = smul.u32 32, %s9
      $region28: #{basicblock_forward.5} parent=23 // pred_fallthru
        _
    $region24: #{basicblock_forward.5} parent=5 // pred_fallthru
      _
    %p137 = scmp.le.s32.totalorder 1, %s9
    %p138 = scmp.lt.s32.totalorder %s9, 3
    %p139 = pnand %p137, %p138
    %p140 = pneg %p139
    // Predicated region
    $region29: #{basicblock_forward.5} parent=5 // pred_check
      _
    $region30: #{basicblock_forward.5} parent=5 // pred_check_branch
      %142 = sbr.rel (%p139) target = $region32
    $region31: #{basicblock_forward.5} parent=5 // pred_region
      %s143 = ssub.s32 %s9, 1
      %s144 = smul.u32 32, %s14
      %p145 = scmp.lt.s32.totalorder %s144, 63
      %s146 = scalar_select %p145, %s144, 63
      %s147 = smul.addr %s146, 4
      %s148 = scalar_lea.vmem %s0, %s147
      %p149 = pneg %p35
      %p150 = pneg %p32
      %p151 = pneg %p56
      %p152 = pneg %p53
      %p153 = pneg %p77
      %p154 = pneg %p74
      %p155 = pneg %p103
      %p156 = pneg %p100
      %s157 = smul.u32 32, %s14
      %p158 = scmp.lt.s32.totalorder %s157, 63
      %s159 = scalar_select %p158, %s157, 63
      %s160 = smul.addr %s159, 4
      %s161 = scalar_lea.vmem %s3, %s160
      %s162 = smul.u32 32, %s14
      %p163 = scmp.lt.s32.totalorder %s162, 63
      %s164 = scalar_select %p163, %s162, 63
      %s165 = smul.addr %s164, 4
      %s166 = scalar_lea.vmem %s0, %s165
      %s167 = smul.u32 32, %s14
      %s168 = smul.u32 32, %s14
      %p169 = scmp.lt.s32.totalorder %s168, 63
      %s170 = scalar_select %p169, %s168, 63
      %s171 = smul.addr %s170, 4
      %s172 = scalar_lea.vmem %s3, %s171
      %s173 = smul.u32 32, %s14
      %v174 = vld [vmem:[%s166] sm:$0xf]
      %v175 = vld [vmem:[%s166 + $0x4] sm:$0xf]
      %v176 = vld [vmem:[%s166 + $0x8] sm:$0xf]
      %v177 = vld [vmem:[%s166 + $0xc] sm:$0xf]
      %v178 = vld [vmem:[%s166 + $0x10] sm:$0xf]
      %v179 = vld [vmem:[%s166 + $0x14] sm:$0xf]
      %v180 = vld [vmem:[%s166 + $0x18] sm:$0xf]
      %v181 = vld [vmem:[%s166 + $0x1c] sm:$0xf]
      %v182 = vld [vmem:[%s166 + $0x20] sm:$0xf]
      %v183 = vld [vmem:[%s166 + $0x24] sm:$0xf]
      %v184 = vld [vmem:[%s166 + $0x28] sm:$0xf]
      %v185 = vld [vmem:[%s166 + $0x2c] sm:$0xf]
      %v186 = vld [vmem:[%s166 + $0x30] sm:$0xf]
      %v187 = vld [vmem:[%s166 + $0x34] sm:$0xf]
      %v188 = vld [vmem:[%s166 + $0x38] sm:$0xf]
      %v189 = vld [vmem:[%s166 + $0x3c] sm:$0xf]
      %v190 = vld [vmem:[%s166 + $0x40] sm:$0xf]
      %v191 = vld [vmem:[%s166 + $0x44] sm:$0xf]
      %v192 = vld [vmem:[%s166 + $0x48] sm:$0xf]
      %v193 = vld [vmem:[%s166 + $0x4c] sm:$0xf]
      %v194 = vld [vmem:[%s166 + $0x50] sm:$0xf]
      %v195 = vld [vmem:[%s166 + $0x54] sm:$0xf]
      %v196 = vld [vmem:[%s166 + $0x58] sm:$0xf]
      %v197 = vld [vmem:[%s166 + $0x5c] sm:$0xf]
      %v198 = vld [vmem:[%s166 + $0x60] sm:$0xf]
      %v199 = vld [vmem:[%s166 + $0x64] sm:$0xf]
      %v200 = vld [vmem:[%s166 + $0x68] sm:$0xf]
      %v201 = vld [vmem:[%s166 + $0x6c] sm:$0xf]
      %v202 = vld [vmem:[%s166 + $0x70] sm:$0xf]
      %v203 = vld [vmem:[%s166 + $0x74] sm:$0xf]
      %v204 = vld [vmem:[%s166 + $0x78] sm:$0xf]
      %v205 = vld [vmem:[%s166 + $0x7c] sm:$0xf]
      %v206 = vunpack.c.l.bf16 %v174
      %v207 = vunpack.c.l.bf16 %v175
      %v208 = vunpack.c.l.bf16 %v176
      %v209 = vunpack.c.l.bf16 %v177
      %v210 = vunpack.c.l.bf16 %v178
      %v211 = vunpack.c.l.bf16 %v179
      %v212 = vunpack.c.l.bf16 %v180
      %v213 = vunpack.c.l.bf16 %v181
      %v214 = vunpack.c.l.bf16 %v182
      %v215 = vunpack.c.l.bf16 %v183
      %v216 = vunpack.c.l.bf16 %v184
      %v217 = vunpack.c.l.bf16 %v185
      %v218 = vunpack.c.l.bf16 %v186
      %v219 = vunpack.c.l.bf16 %v187
      %v220 = vunpack.c.l.bf16 %v188
      %v221 = vunpack.c.l.bf16 %v189
      %v222 = vunpack.c.l.bf16 %v190
      %v223 = vunpack.c.l.bf16 %v191
      %v224 = vunpack.c.l.bf16 %v192
      %v225 = vunpack.c.l.bf16 %v193
      %v226 = vunpack.c.l.bf16 %v194
      %v227 = vunpack.c.l.bf16 %v195
      %v228 = vunpack.c.l.bf16 %v196
      %v229 = vunpack.c.l.bf16 %v197
      %v230 = vunpack.c.l.bf16 %v198
      %v231 = vunpack.c.l.bf16 %v199
      %v232 = vunpack.c.l.bf16 %v200
      %v233 = vunpack.c.l.bf16 %v201
      %v234 = vunpack.c.l.bf16 %v202
      %v235 = vunpack.c.l.bf16 %v203
      %v236 = vunpack.c.l.bf16 %v204
      %v237 = vunpack.c.l.bf16 %v205
      %v238 = vld [vmem:[%s1] sm:$0x1]
      %v240 = vperm.slane %v238, 0
      %v242 = vmul.f32 %v206, %v240
      %v243 = vmul.f32 %v207, %v240
      %v244 = vmul.f32 %v208, %v240
      %v245 = vmul.f32 %v209, %v240
      %v246 = vmul.f32 %v210, %v240
      %v247 = vmul.f32 %v211, %v240
      %v248 = vmul.f32 %v212, %v240
      %v249 = vmul.f32 %v213, %v240
      %v250 = vmul.f32 %v214, %v240
      %v251 = vmul.f32 %v215, %v240
      %v252 = vmul.f32 %v216, %v240
      %v253 = vmul.f32 %v217, %v240
      %v254 = vmul.f32 %v218, %v240
      %v255 = vmul.f32 %v219, %v240
      %v256 = vmul.f32 %v220, %v240
      %v257 = vmul.f32 %v221, %v240
      %v258 = vmul.f32 %v222, %v240
      %v259 = vmul.f32 %v223, %v240
      %v260 = vmul.f32 %v224, %v240
      %v261 = vmul.f32 %v225, %v240
      %v262 = vmul.f32 %v226, %v240
      %v263 = vmul.f32 %v227, %v240
      %v264 = vmul.f32 %v228, %v240
      %v265 = vmul.f32 %v229, %v240
      %v266 = vmul.f32 %v230, %v240
      %v267 = vmul.f32 %v231, %v240
      %v268 = vmul.f32 %v232, %v240
      %v269 = vmul.f32 %v233, %v240
      %v270 = vmul.f32 %v234, %v240
      %v271 = vmul.f32 %v235, %v240
      %v272 = vmul.f32 %v236, %v240
      %v273 = vmul.f32 %v237, %v240
      %v274 = vld [vmem:[%s2] sm:$0x1]
      %v276 = vperm.slane %v274, 0
      %v278 = vadd.f32 %v242, %v276
      %v279 = vadd.f32 %v243, %v276
      %v280 = vadd.f32 %v244, %v276
      %v281 = vadd.f32 %v245, %v276
      %v282 = vadd.f32 %v246, %v276
      %v283 = vadd.f32 %v247, %v276
      %v284 = vadd.f32 %v248, %v276
      %v285 = vadd.f32 %v249, %v276
      %v286 = vadd.f32 %v250, %v276
      %v287 = vadd.f32 %v251, %v276
      %v288 = vadd.f32 %v252, %v276
      %v289 = vadd.f32 %v253, %v276
      %v290 = vadd.f32 %v254, %v276
      %v291 = vadd.f32 %v255, %v276
      %v292 = vadd.f32 %v256, %v276
      %v293 = vadd.f32 %v257, %v276
      %v294 = vadd.f32 %v258, %v276
      %v295 = vadd.f32 %v259, %v276
      %v296 = vadd.f32 %v260, %v276
      %v297 = vadd.f32 %v261, %v276
      %v298 = vadd.f32 %v262, %v276
      %v299 = vadd.f32 %v263, %v276
      %v300 = vadd.f32 %v264, %v276
      %v301 = vadd.f32 %v265, %v276
      %v302 = vadd.f32 %v266, %v276
      %v303 = vadd.f32 %v267, %v276
      %v304 = vadd.f32 %v268, %v276
      %v305 = vadd.f32 %v269, %v276
      %v306 = vadd.f32 %v270, %v276
      %v307 = vadd.f32 %v271, %v276
      %v308 = vadd.f32 %v272, %v276
      %v309 = vadd.f32 %v273, %v276
      %v310 = vmax.f32 %v278, 0.0
      %v311 = vmax.f32 %v279, 0.0
      %v312 = vmax.f32 %v280, 0.0
      %v313 = vmax.f32 %v281, 0.0
      %v314 = vmax.f32 %v282, 0.0
      %v315 = vmax.f32 %v283, 0.0
      %v316 = vmax.f32 %v284, 0.0
      %v317 = vmax.f32 %v285, 0.0
      %v318 = vmax.f32 %v286, 0.0
      %v319 = vmax.f32 %v287, 0.0
      %v320 = vmax.f32 %v288, 0.0
      %v321 = vmax.f32 %v289, 0.0
      %v322 = vmax.f32 %v290, 0.0
      %v323 = vmax.f32 %v291, 0.0
      %v324 = vmax.f32 %v292, 0.0
      %v325 = vmax.f32 %v293, 0.0
      %v326 = vmax.f32 %v294, 0.0
      %v327 = vmax.f32 %v295, 0.0
      %v328 = vmax.f32 %v296, 0.0
      %v329 = vmax.f32 %v297, 0.0
      %v330 = vmax.f32 %v298, 0.0
      %v331 = vmax.f32 %v299, 0.0
      %v332 = vmax.f32 %v300, 0.0
      %v333 = vmax.f32 %v301, 0.0
      %v334 = vmax.f32 %v302, 0.0
      %v335 = vmax.f32 %v303, 0.0
      %v336 = vmax.f32 %v304, 0.0
      %v337 = vmax.f32 %v305, 0.0
      %v338 = vmax.f32 %v306, 0.0
      %v339 = vmax.f32 %v307, 0.0
      %v340 = vmax.f32 %v308, 0.0
      %v341 = vmax.f32 %v309, 0.0
      %v342 = vpack.c.bf16 %v310, %v310
      %v343 = vpack.c.bf16 %v311, %v311
      %v344 = vpack.c.bf16 %v312, %v312
      %v345 = vpack.c.bf16 %v313, %v313
      %v346 = vpack.c.bf16 %v314, %v314
      %v347 = vpack.c.bf16 %v315, %v315
      %v348 = vpack.c.bf16 %v316, %v316
      %v349 = vpack.c.bf16 %v317, %v317
      %v350 = vpack.c.bf16 %v318, %v318
      %v351 = vpack.c.bf16 %v319, %v319
      %v352 = vpack.c.bf16 %v320, %v320
      %v353 = vpack.c.bf16 %v321, %v321
      %v354 = vpack.c.bf16 %v322, %v322
      %v355 = vpack.c.bf16 %v323, %v323
      %v356 = vpack.c.bf16 %v324, %v324
      %v357 = vpack.c.bf16 %v325, %v325
      %v358 = vpack.c.bf16 %v326, %v326
      %v359 = vpack.c.bf16 %v327, %v327
      %v360 = vpack.c.bf16 %v328, %v328
      %v361 = vpack.c.bf16 %v329, %v329
      %v362 = vpack.c.bf16 %v330, %v330
      %v363 = vpack.c.bf16 %v331, %v331
      %v364 = vpack.c.bf16 %v332, %v332
      %v365 = vpack.c.bf16 %v333, %v333
      %v366 = vpack.c.bf16 %v334, %v334
      %v367 = vpack.c.bf16 %v335, %v335
      %v368 = vpack.c.bf16 %v336, %v336
      %v369 = vpack.c.bf16 %v337, %v337
      %v370 = vpack.c.bf16 %v338, %v338
      %v371 = vpack.c.bf16 %v339, %v339
      %v372 = vpack.c.bf16 %v340, %v340
      %v373 = vpack.c.bf16 %v341, %v341
      %374 = vst [vmem:[%s172] sm:$0xf] %v342
      %375 = vst [vmem:[%s172 + $0x4] sm:$0xf] %v343
      %376 = vst [vmem:[%s172 + $0x8] sm:$0xf] %v344
      %377 = vst [vmem:[%s172 + $0xc] sm:$0xf] %v345
      %378 = vst [vmem:[%s172 + $0x10] sm:$0xf] %v346
      %379 = vst [vmem:[%s172 + $0x14] sm:$0xf] %v347
      %380 = vst [vmem:[%s172 + $0x18] sm:$0xf] %v348
      %381 = vst [vmem:[%s172 + $0x1c] sm:$0xf] %v349
      %382 = vst [vmem:[%s172 + $0x20] sm:$0xf] %v350
      %383 = vst [vmem:[%s172 + $0x24] sm:$0xf] %v351
      %384 = vst [vmem:[%s172 + $0x28] sm:$0xf] %v352
      %385 = vst [vmem:[%s172 + $0x2c] sm:$0xf] %v353
      %386 = vst [vmem:[%s172 + $0x30] sm:$0xf] %v354
      %387 = vst [vmem:[%s172 + $0x34] sm:$0xf] %v355
      %388 = vst [vmem:[%s172 + $0x38] sm:$0xf] %v356
      %389 = vst [vmem:[%s172 + $0x3c] sm:$0xf] %v357
      %390 = vst [vmem:[%s172 + $0x40] sm:$0xf] %v358
      %391 = vst [vmem:[%s172 + $0x44] sm:$0xf] %v359
      %392 = vst [vmem:[%s172 + $0x48] sm:$0xf] %v360
      %393 = vst [vmem:[%s172 + $0x4c] sm:$0xf] %v361
      %394 = vst [vmem:[%s172 + $0x50] sm:$0xf] %v362
      %395 = vst [vmem:[%s172 + $0x54] sm:$0xf] %v363
      %396 = vst [vmem:[%s172 + $0x58] sm:$0xf] %v364
      %397 = vst [vmem:[%s172 + $0x5c] sm:$0xf] %v365
      %398 = vst [vmem:[%s172 + $0x60] sm:$0xf] %v366
      %399 = vst [vmem:[%s172 + $0x64] sm:$0xf] %v367
      %400 = vst [vmem:[%s172 + $0x68] sm:$0xf] %v368
      %401 = vst [vmem:[%s172 + $0x6c] sm:$0xf] %v369
      %402 = vst [vmem:[%s172 + $0x70] sm:$0xf] %v370
      %403 = vst [vmem:[%s172 + $0x74] sm:$0xf] %v371
      %404 = vst [vmem:[%s172 + $0x78] sm:$0xf] %v372
      %405 = vst [vmem:[%s172 + $0x7c] sm:$0xf] %v373
      %s406 = smul.u32 32, %s14
      %p407 = scmp.lt.s32.totalorder %s406, 63
      %s408 = scalar_select %p407, %s406, 63
      %s409 = smul.addr %s408, 4
      %s410 = scalar_lea.vmem %s3, %s409
      // Predicated region
      $region33: #{basicblock_forward.5} parent=31 // pred_check
        %p411 = pneg %p100
      $region34: #{basicblock_forward.5} parent=31 // pred_check_branch
        %413 = sbr.rel (%p411) target = $region36
      $region35: #{basicblock_forward.5} parent=31 // pred_region
        %s414 = smul.u32 32, %s14
      $region36: #{basicblock_forward.5} parent=31 // pred_fallthru
        _
    $region32: #{basicblock_forward.5} parent=5 // pred_fallthru
      _
    %p415 = scmp.le.s32.totalorder 2, %s9
    // Predicated region
    $region37: #{basicblock_forward.5} parent=5 // pred_check
      %p416 = pneg %p415
    $region38: #{basicblock_forward.5} parent=5 // pred_check_branch
      %418 = sbr.rel (%p416) target = $region40
    $region39: #{basicblock_forward.5} parent=5 // pred_region
      %s419 = ssub.s32 %s9, 2
      // Predicated region
      $region41: #{basicblock_forward.5} parent=39 // pred_check
        %p420 = pneg %p106
      $region42: #{basicblock_forward.5} parent=39 // pred_check_branch
        %422 = sbr.rel (%p420) target = $region44
      $region43: #{basicblock_forward.5} parent=39 // pred_region
        %s423 = smul.u32 32, %s15
        %p424 = scmp.lt.s32.totalorder %s423, 63
        %s425 = scalar_select %p424, %s423, 63
        %s426 = smul.addr %s425, 4
        %s427 = scalar_lea.vmem %s3, %s426
      $region44: #{basicblock_forward.5} parent=39 // pred_fallthru
        _
    $region40: #{basicblock_forward.5} parent=5 // pred_fallthru
      _
  $region6: #{basicblock_forward.5} parent=0 // loop_footer
    %s13 = sadd.s32 1, %s9
  $region7: #{basicblock_forward.5} parent=0 // loop_footer_branch
    %8 = sbr.rel target = $region3
  $region8: #{basicblock_forward.5} parent=0 // loop_exit
    _

// kernel: basicblock_forward.7
$region0: #{basicblock_forward.7}
  #allocation0 [shape = 'u32[]', space=smem, size = 0x4, offset = 0x4, fixed_abs, tag = 'smem constant byte address 0x4 - core index']
  #allocation1 [shape = 'u32[72,128]{1,0:T(1,128)}', space=vmem, size = 0x9000, scoped, tag = 'internal scratch']
  %s0 = inlined_call_operand.vmem [shape: bf16[512,128], index: 0, kind: input, shape index: {}]
  %s1 = inlined_call_operand.vmem [shape: f32[1,128], index: 1, kind: input, shape index: {}]
  %s2 = inlined_call_operand.vmem [shape: f32[1,128], index: 2, kind: input, shape index: {}]
  %s3 = inlined_call_operand.vmem [shape: bf16[512,128], index: 3, kind: input, shape index: {}]
  %s4 = inlined_call_operand.vmem [shape: f32[512,128], index: 4, kind: output, shape index: {}]
  %s5 = sld [smem:[#allocation0]]
  $region49: #{basicblock_forward.7} parent=0
    _
  %s7 = ssub.s32 1, %s5
  %s8 = scalar_select 0, %s7, %s5
  loop: start=0, step=1, limit=4
  $region2: #{basicblock_forward.7} parent=0 // loop_pre_header
    _
  $region3: #{basicblock_forward.7} parent=0 // loop_header
    %s10 = sphi 0, %s14
    %p11 = scmp.ge.s32.totalorder %s10, 4
    %s20 = sphi 0, %s22
    %s23 = sphi 0, %s20
    %s24 = sphi 0, %s23
    %s40 = sphi 0, %s24
    %s44 = sphi 0, %s44
    %s46 = sphi 0, %s44
    %s47 = sphi 0, %s46
    %s61 = sphi 0, %s47
    %s65 = sphi 0, %s65
    %s67 = sphi 0, %s65
    %s68 = sphi 0, %s67
    %s82 = sphi 0, %s68
    %s88 = sphi 0, %s90
    %s91 = sphi 0, %s88
    %s92 = sphi 0, %s91
    %s108 = sphi 0, %s92
    %s114 = sphi 0, %s116
    %s117 = sphi 0, %s114
    %s118 = sphi 0, %s117
    %s134 = sphi 0, %s118
  $region4: #{basicblock_forward.7} parent=0 // loop_header_branch
    %13 = sbr.rel (%p11) target = $region8
  $region5: #{basicblock_forward.7} parent=0 // loop_body
    %s15 = ssub.s32 %s10, 1
    %s16 = ssub.s32 %s10, 2
    %s17 = sadd.s32 %s10, 1
    %s18 = ssub.s32 %s10, %s17
    %p19 = scmp.eq.s32.totalorder %s18, 0
    %s21 = sadd.s32 %s20, 1
    %s22 = scalar_select %p19, %s20, %s21
    %p25 = pneg %p19
    %p26 = scmp.eq.s32.totalorder %s10, 1
    %p27 = por %p25, %p26
    %p28 = scmp.ne.s32.totalorder %s20, %s23
    %p29 = scmp.eq.s32.totalorder %s10, 0
    %p30 = por %p28, %p29
    %p31 = scmp.ne.s32.totalorder %s20, %s23
    %p32 = scmp.eq.s32.totalorder %s15, 1
    %p33 = por %p31, %p32
    %p34 = scmp.ne.s32.totalorder %s23, %s24
    %p35 = scmp.eq.s32.totalorder %s15, 0
    %p36 = por %p34, %p35
    %p37 = scmp.ne.s32.totalorder %s23, %s24
    %p38 = scmp.eq.s32.totalorder %s16, 1
    %p39 = por %p37, %p38
    %p41 = scmp.ne.s32.totalorder %s24, %s40
    %p42 = scmp.eq.s32.totalorder %s16, 0
    %p43 = por %p41, %p42
    %s45 = sadd.s32 %s44, 1
    %p48 = scmp.eq.s32.totalorder %s10, 1
    %p49 = scmp.ne.s32.totalorder %s44, %s46
    %p50 = scmp.eq.s32.totalorder %s10, 0
    %p51 = por %p49, %p50
    %p52 = scmp.ne.s32.totalorder %s44, %s46
    %p53 = scmp.eq.s32.totalorder %s15, 1
    %p54 = por %p52, %p53
    %p55 = scmp.ne.s32.totalorder %s46, %s47
    %p56 = scmp.eq.s32.totalorder %s15, 0
    %p57 = por %p55, %p56
    %p58 = scmp.ne.s32.totalorder %s46, %s47
    %p59 = scmp.eq.s32.totalorder %s16, 1
    %p60 = por %p58, %p59
    %p62 = scmp.ne.s32.totalorder %s47, %s61
    %p63 = scmp.eq.s32.totalorder %s16, 0
    %p64 = por %p62, %p63
    %s66 = sadd.s32 %s65, 1
    %p69 = scmp.eq.s32.totalorder %s10, 1
    %p70 = scmp.ne.s32.totalorder %s65, %s67
    %p71 = scmp.eq.s32.totalorder %s10, 0
    %p72 = por %p70, %p71
    %p73 = scmp.ne.s32.totalorder %s65, %s67
    %p74 = scmp.eq.s32.totalorder %s15, 1
    %p75 = por %p73, %p74
    %p76 = scmp.ne.s32.totalorder %s67, %s68
    %p77 = scmp.eq.s32.totalorder %s15, 0
    %p78 = por %p76, %p77
    %p79 = scmp.ne.s32.totalorder %s67, %s68
    %p80 = scmp.eq.s32.totalorder %s16, 1
    %p81 = por %p79, %p80
    %p83 = scmp.ne.s32.totalorder %s68, %s82
    %p84 = scmp.eq.s32.totalorder %s16, 0
    %p85 = por %p83, %p84
    %s86 = ssub.s32 %s10, %s17
    %p87 = scmp.eq.s32.totalorder %s86, 0
    %s89 = sadd.s32 %s88, 1
    %s90 = scalar_select %p87, %s88, %s89
    %p93 = pneg %p87
    %p94 = scmp.eq.s32.totalorder %s10, 1
    %p95 = por %p93, %p94
    %p96 = scmp.ne.s32.totalorder %s88, %s91
    %p97 = scmp.eq.s32.totalorder %s10, 0
    %p98 = por %p96, %p97
    %p99 = scmp.ne.s32.totalorder %s88, %s91
    %p100 = scmp.eq.s32.totalorder %s15, 1
    %p101 = por %p99, %p100
    %p102 = scmp.ne.s32.totalorder %s91, %s92
    %p103 = scmp.eq.s32.totalorder %s15, 0
    %p104 = por %p102, %p103
    %p105 = scmp.ne.s32.totalorder %s91, %s92
    %p106 = scmp.eq.s32.totalorder %s16, 1
    %p107 = por %p105, %p106
    %p109 = scmp.ne.s32.totalorder %s92, %s108
    %p110 = scmp.eq.s32.totalorder %s16, 0
    %p111 = por %p109, %p110
    %s112 = ssub.s32 %s10, %s17
    %p113 = scmp.eq.s32.totalorder %s112, 0
    %s115 = sadd.s32 %s114, 1
    %s116 = scalar_select %p113, %s114, %s115
    %p119 = pneg %p113
    %p120 = scmp.eq.s32.totalorder %s10, 1
    %p121 = por %p119, %p120
    %p122 = scmp.ne.s32.totalorder %s114, %s117
    %p123 = scmp.eq.s32.totalorder %s10, 0
    %p124 = por %p122, %p123
    %p125 = scmp.ne.s32.totalorder %s114, %s117
    %p126 = scmp.eq.s32.totalorder %s15, 1
    %p127 = por %p125, %p126
    %p128 = scmp.ne.s32.totalorder %s117, %s118
    %p129 = scmp.eq.s32.totalorder %s15, 0
    %p130 = por %p128, %p129
    %p131 = scmp.ne.s32.totalorder %s117, %s118
    %p132 = scmp.eq.s32.totalorder %s16, 1
    %p133 = por %p131, %p132
    %p135 = scmp.ne.s32.totalorder %s118, %s134
    %p136 = scmp.eq.s32.totalorder %s16, 0
    %p137 = por %p135, %p136
    %p138 = scmp.le.s32.totalorder 1, %s10
    %p139 = scmp.lt.s32.totalorder %s10, 3
    %p140 = pnand %p138, %p139
    %p141 = pneg %p140
    // Predicated region
    $region9: #{basicblock_forward.7} parent=5 // pred_check
      _
    $region10: #{basicblock_forward.7} parent=5 // pred_check_branch
      %143 = sbr.rel (%p140) target = $region12
    $region11: #{basicblock_forward.7} parent=5 // pred_region
      %s144 = ssub.s32 %s10, 1
      // Predicated region
      $region13: #{basicblock_forward.7} parent=11 // pred_check
        %p145 = pneg %p57
      $region14: #{basicblock_forward.7} parent=11 // pred_check_branch
        %147 = sbr.rel (%p145) target = $region16
      $region15: #{basicblock_forward.7} parent=11 // pred_region
        _
      $region16: #{basicblock_forward.7} parent=11 // pred_fallthru
        _
      // Predicated region
      $region17: #{basicblock_forward.7} parent=11 // pred_check
        %p148 = pneg %p78
      $region18: #{basicblock_forward.7} parent=11 // pred_check_branch
        %150 = sbr.rel (%p148) target = $region20
      $region19: #{basicblock_forward.7} parent=11 // pred_region
        _
      $region20: #{basicblock_forward.7} parent=11 // pred_fallthru
        _
    $region12: #{basicblock_forward.7} parent=5 // pred_fallthru
      _
    %p151 = scmp.lt.s32.totalorder %s10, 2
    // Predicated region
    $region21: #{basicblock_forward.7} parent=5 // pred_check
      %p152 = pneg %p151
    $region22: #{basicblock_forward.7} parent=5 // pred_check_branch
      %154 = sbr.rel (%p152) target = $region24
    $region23: #{basicblock_forward.7} parent=5 // pred_region
      // Predicated region
      $region25: #{basicblock_forward.7} parent=23 // pred_check
        %p155 = pneg %p30
      $region26: #{basicblock_forward.7} parent=23 // pred_check_branch
        %157 = sbr.rel (%p155) target = $region28
      $region27: #{basicblock_forward.7} parent=23 // pred_region
        %s158 = smul.u32 32, %s10
        %p159 = scmp.lt.s32.totalorder %s158, 63
        %s160 = scalar_select %p159, %s158, 63
        %s161 = smul.addr %s160, 4
        %s162 = scalar_lea.vmem %s0, %s161
        %s163 = smul.u32 32, %s10
      $region28: #{basicblock_forward.7} parent=23 // pred_fallthru
        _
      // Predicated region
      $region29: #{basicblock_forward.7} parent=23 // pred_check
        %p164 = pneg %p98
      $region30: #{basicblock_forward.7} parent=23 // pred_check_branch
        %166 = sbr.rel (%p164) target = $region32
      $region31: #{basicblock_forward.7} parent=23 // pred_region
        %s167 = smul.u32 32, %s10
        %p168 = scmp.lt.s32.totalorder %s167, 63
        %s169 = scalar_select %p168, %s167, 63
        %s170 = smul.addr %s169, 4
        %s171 = scalar_lea.vmem %s3, %s170
        %s172 = smul.u32 32, %s10
      $region32: #{basicblock_forward.7} parent=23 // pred_fallthru
        _
    $region24: #{basicblock_forward.7} parent=5 // pred_fallthru
      _
    %p173 = scmp.le.s32.totalorder 1, %s10
    %p174 = scmp.lt.s32.totalorder %s10, 3
    %p175 = pnand %p173, %p174
    %p176 = pneg %p175
    // Predicated region
    $region33: #{basicblock_forward.7} parent=5 // pred_check
      _
    $region34: #{basicblock_forward.7} parent=5 // pred_check_branch
      %178 = sbr.rel (%p175) target = $region36
    $region35: #{basicblock_forward.7} parent=5 // pred_region
      %s179 = ssub.s32 %s10, 1
      %s180 = smul.u32 32, %s15
      %p181 = scmp.lt.s32.totalorder %s180, 63
      %s182 = scalar_select %p181, %s180, 63
      %s183 = smul.addr %s182, 4
      %s184 = scalar_lea.vmem %s0, %s183
      %p185 = pneg %p36
      %p186 = pneg %p33
      %p187 = pneg %p57
      %p188 = pneg %p54
      %p189 = pneg %p78
      %p190 = pneg %p75
      %s191 = smul.u32 32, %s15
      %p192 = scmp.lt.s32.totalorder %s191, 63
      %s193 = scalar_select %p192, %s191, 63
      %s194 = smul.addr %s193, 4
      %s195 = scalar_lea.vmem %s3, %s194
      %p196 = pneg %p104
      %p197 = pneg %p101
      %p198 = pneg %p130
      %p199 = pneg %p127
      %s200 = smul.u32 32, %s15
      %p201 = scmp.lt.s32.totalorder %s200, 63
      %s202 = scalar_select %p201, %s200, 63
      %s203 = smul.addr %s202, 8
      %s204 = scalar_lea.vmem %s4, %s203
      %s205 = smul.u32 32, %s15
      %p206 = scmp.lt.s32.totalorder %s205, 63
      %s207 = scalar_select %p206, %s205, 63
      %s208 = smul.addr %s207, 4
      %s209 = scalar_lea.vmem %s0, %s208
      %s210 = smul.u32 32, %s15
      %s211 = smul.u32 32, %s15
      %p212 = scmp.lt.s32.totalorder %s211, 63
      %s213 = scalar_select %p212, %s211, 63
      %s214 = smul.addr %s213, 4
      %s215 = scalar_lea.vmem %s3, %s214
      %s216 = smul.u32 32, %s15
      %s217 = smul.u32 32, %s15
      %p218 = scmp.lt.s32.totalorder %s217, 63
      %s219 = scalar_select %p218, %s217, 63
      %s220 = smul.addr %s219, 8
      %s221 = scalar_lea.vmem %s4, %s220
      %s222 = smul.u32 32, %s15
      %v223 = vld [vmem:[%s209] sm:$0xf]
      %v224 = vld [vmem:[%s209 + $0x4] sm:$0xf]
      %v225 = vld [vmem:[%s209 + $0x8] sm:$0xf]
      %v226 = vld [vmem:[%s209 + $0xc] sm:$0xf]
      %v227 = vld [vmem:[%s209 + $0x10] sm:$0xf]
      %v228 = vld [vmem:[%s209 + $0x14] sm:$0xf]
      %v229 = vld [vmem:[%s209 + $0x18] sm:$0xf]
      %v230 = vld [vmem:[%s209 + $0x1c] sm:$0xf]
      %v231 = vld [vmem:[%s209 + $0x20] sm:$0xf]
      %v232 = vld [vmem:[%s209 + $0x24] sm:$0xf]
      %v233 = vld [vmem:[%s209 + $0x28] sm:$0xf]
      %v234 = vld [vmem:[%s209 + $0x2c] sm:$0xf]
      %v235 = vld [vmem:[%s209 + $0x30] sm:$0xf]
      %v236 = vld [vmem:[%s209 + $0x34] sm:$0xf]
      %v237 = vld [vmem:[%s209 + $0x38] sm:$0xf]
      %v238 = vld [vmem:[%s209 + $0x3c] sm:$0xf]
      %v239 = vld [vmem:[%s209 + $0x40] sm:$0xf]
      %v240 = vld [vmem:[%s209 + $0x44] sm:$0xf]
      %v241 = vld [vmem:[%s209 + $0x48] sm:$0xf]
      %v242 = vld [vmem:[%s209 + $0x4c] sm:$0xf]
      %v243 = vld [vmem:[%s209 + $0x50] sm:$0xf]
      %v244 = vld [vmem:[%s209 + $0x54] sm:$0xf]
      %v245 = vld [vmem:[%s209 + $0x58] sm:$0xf]
      %v246 = vld [vmem:[%s209 + $0x5c] sm:$0xf]
      %v247 = vld [vmem:[%s209 + $0x60] sm:$0xf]
      %v248 = vld [vmem:[%s209 + $0x64] sm:$0xf]
      %v249 = vld [vmem:[%s209 + $0x68] sm:$0xf]
      %v250 = vld [vmem:[%s209 + $0x6c] sm:$0xf]
      %v251 = vld [vmem:[%s209 + $0x70] sm:$0xf]
      %v252 = vld [vmem:[%s209 + $0x74] sm:$0xf]
      %v253 = vld [vmem:[%s209 + $0x78] sm:$0xf]
      %v254 = vld [vmem:[%s209 + $0x7c] sm:$0xf]
      %v255 = vunpack.c.l.bf16 %v223
      %v256 = vunpack.c.l.bf16 %v224
      %v257 = vunpack.c.l.bf16 %v225
      %v258 = vunpack.c.l.bf16 %v226
      %v259 = vunpack.c.l.bf16 %v227
      %v260 = vunpack.c.l.bf16 %v228
      %v261 = vunpack.c.l.bf16 %v229
      %v262 = vunpack.c.l.bf16 %v230
      %v263 = vunpack.c.l.bf16 %v231
      %v264 = vunpack.c.l.bf16 %v232
      %v265 = vunpack.c.l.bf16 %v233
      %v266 = vunpack.c.l.bf16 %v234
      %v267 = vunpack.c.l.bf16 %v235
      %v268 = vunpack.c.l.bf16 %v236
      %v269 = vunpack.c.l.bf16 %v237
      %v270 = vunpack.c.l.bf16 %v238
      %v271 = vunpack.c.l.bf16 %v239
      %v272 = vunpack.c.l.bf16 %v240
      %v273 = vunpack.c.l.bf16 %v241
      %v274 = vunpack.c.l.bf16 %v242
      %v275 = vunpack.c.l.bf16 %v243
      %v276 = vunpack.c.l.bf16 %v244
      %v277 = vunpack.c.l.bf16 %v245
      %v278 = vunpack.c.l.bf16 %v246
      %v279 = vunpack.c.l.bf16 %v247
      %v280 = vunpack.c.l.bf16 %v248
      %v281 = vunpack.c.l.bf16 %v249
      %v282 = vunpack.c.l.bf16 %v250
      %v283 = vunpack.c.l.bf16 %v251
      %v284 = vunpack.c.l.bf16 %v252
      %v285 = vunpack.c.l.bf16 %v253
      %v286 = vunpack.c.l.bf16 %v254
      %v287 = vld [vmem:[%s1] sm:$0x1]
      %v289 = vperm.slane %v287, 0
      %v291 = vmul.f32 %v255, %v289
      %v292 = vmul.f32 %v256, %v289
      %v293 = vmul.f32 %v257, %v289
      %v294 = vmul.f32 %v258, %v289
      %v295 = vmul.f32 %v259, %v289
      %v296 = vmul.f32 %v260, %v289
      %v297 = vmul.f32 %v261, %v289
      %v298 = vmul.f32 %v262, %v289
      %v299 = vmul.f32 %v263, %v289
      %v300 = vmul.f32 %v264, %v289
      %v301 = vmul.f32 %v265, %v289
      %v302 = vmul.f32 %v266, %v289
      %v303 = vmul.f32 %v267, %v289
      %v304 = vmul.f32 %v268, %v289
      %v305 = vmul.f32 %v269, %v289
      %v306 = vmul.f32 %v270, %v289
      %v307 = vmul.f32 %v271, %v289
      %v308 = vmul.f32 %v272, %v289
      %v309 = vmul.f32 %v273, %v289
      %v310 = vmul.f32 %v274, %v289
      %v311 = vmul.f32 %v275, %v289
      %v312 = vmul.f32 %v276, %v289
      %v313 = vmul.f32 %v277, %v289
      %v314 = vmul.f32 %v278, %v289
      %v315 = vmul.f32 %v279, %v289
      %v316 = vmul.f32 %v280, %v289
      %v317 = vmul.f32 %v281, %v289
      %v318 = vmul.f32 %v282, %v289
      %v319 = vmul.f32 %v283, %v289
      %v320 = vmul.f32 %v284, %v289
      %v321 = vmul.f32 %v285, %v289
      %v322 = vmul.f32 %v286, %v289
      %v323 = vld [vmem:[%s2] sm:$0x1]
      %v325 = vperm.slane %v323, 0
      %v327 = vadd.f32 %v291, %v325
      %v328 = vadd.f32 %v292, %v325
      %v329 = vadd.f32 %v293, %v325
      %v330 = vadd.f32 %v294, %v325
      %v331 = vadd.f32 %v295, %v325
      %v332 = vadd.f32 %v296, %v325
      %v333 = vadd.f32 %v297, %v325
      %v334 = vadd.f32 %v298, %v325
      %v335 = vadd.f32 %v299, %v325
      %v336 = vadd.f32 %v300, %v325
      %v337 = vadd.f32 %v301, %v325
      %v338 = vadd.f32 %v302, %v325
      %v339 = vadd.f32 %v303, %v325
      %v340 = vadd.f32 %v304, %v325
      %v341 = vadd.f32 %v305, %v325
      %v342 = vadd.f32 %v306, %v325
      %v343 = vadd.f32 %v307, %v325
      %v344 = vadd.f32 %v308, %v325
      %v345 = vadd.f32 %v309, %v325
      %v346 = vadd.f32 %v310, %v325
      %v347 = vadd.f32 %v311, %v325
      %v348 = vadd.f32 %v312, %v325
      %v349 = vadd.f32 %v313, %v325
      %v350 = vadd.f32 %v314, %v325
      %v351 = vadd.f32 %v315, %v325
      %v352 = vadd.f32 %v316, %v325
      %v353 = vadd.f32 %v317, %v325
      %v354 = vadd.f32 %v318, %v325
      %v355 = vadd.f32 %v319, %v325
      %v356 = vadd.f32 %v320, %v325
      %v357 = vadd.f32 %v321, %v325
      %v358 = vadd.f32 %v322, %v325
      %v359 = vld [vmem:[%s215] sm:$0xf]
      %v360 = vld [vmem:[%s215 + $0x4] sm:$0xf]
      %v361 = vld [vmem:[%s215 + $0x8] sm:$0xf]
      %v362 = vld [vmem:[%s215 + $0xc] sm:$0xf]
      %v363 = vld [vmem:[%s215 + $0x10] sm:$0xf]
      %v364 = vld [vmem:[%s215 + $0x14] sm:$0xf]
      %v365 = vld [vmem:[%s215 + $0x18] sm:$0xf]
      %v366 = vld [vmem:[%s215 + $0x1c] sm:$0xf]
      %v367 = vld [vmem:[%s215 + $0x20] sm:$0xf]
      %v368 = vld [vmem:[%s215 + $0x24] sm:$0xf]
      %v369 = vld [vmem:[%s215 + $0x28] sm:$0xf]
      %v370 = vld [vmem:[%s215 + $0x2c] sm:$0xf]
      %v371 = vld [vmem:[%s215 + $0x30] sm:$0xf]
      %v372 = vld [vmem:[%s215 + $0x34] sm:$0xf]
      %v373 = vld [vmem:[%s215 + $0x38] sm:$0xf]
      %v374 = vld [vmem:[%s215 + $0x3c] sm:$0xf]
      %v375 = vld [vmem:[%s215 + $0x40] sm:$0xf]
      %v376 = vld [vmem:[%s215 + $0x44] sm:$0xf]
      %v377 = vld [vmem:[%s215 + $0x48] sm:$0xf]
      %v378 = vld [vmem:[%s215 + $0x4c] sm:$0xf]
      %v379 = vld [vmem:[%s215 + $0x50] sm:$0xf]
      %v380 = vld [vmem:[%s215 + $0x54] sm:$0xf]
      %v381 = vld [vmem:[%s215 + $0x58] sm:$0xf]
      %v382 = vld [vmem:[%s215 + $0x5c] sm:$0xf]
      %v383 = vld [vmem:[%s215 + $0x60] sm:$0xf]
      %v384 = vld [vmem:[%s215 + $0x64] sm:$0xf]
      %v385 = vld [vmem:[%s215 + $0x68] sm:$0xf]
      %v386 = vld [vmem:[%s215 + $0x6c] sm:$0xf]
      %v387 = vld [vmem:[%s215 + $0x70] sm:$0xf]
      %v388 = vld [vmem:[%s215 + $0x74] sm:$0xf]
      %v389 = vld [vmem:[%s215 + $0x78] sm:$0xf]
      %v390 = vld [vmem:[%s215 + $0x7c] sm:$0xf]
      %v391 = vunpack.c.l.bf16 %v359
      %v392 = vunpack.c.l.bf16 %v360
      %v393 = vunpack.c.l.bf16 %v361
      %v394 = vunpack.c.l.bf16 %v362
      %v395 = vunpack.c.l.bf16 %v363
      %v396 = vunpack.c.l.bf16 %v364
      %v397 = vunpack.c.l.bf16 %v365
      %v398 = vunpack.c.l.bf16 %v366
      %v399 = vunpack.c.l.bf16 %v367
      %v400 = vunpack.c.l.bf16 %v368
      %v401 = vunpack.c.l.bf16 %v369
      %v402 = vunpack.c.l.bf16 %v370
      %v403 = vunpack.c.l.bf16 %v371
      %v404 = vunpack.c.l.bf16 %v372
      %v405 = vunpack.c.l.bf16 %v373
      %v406 = vunpack.c.l.bf16 %v374
      %v407 = vunpack.c.l.bf16 %v375
      %v408 = vunpack.c.l.bf16 %v376
      %v409 = vunpack.c.l.bf16 %v377
      %v410 = vunpack.c.l.bf16 %v378
      %v411 = vunpack.c.l.bf16 %v379
      %v412 = vunpack.c.l.bf16 %v380
      %v413 = vunpack.c.l.bf16 %v381
      %v414 = vunpack.c.l.bf16 %v382
      %v415 = vunpack.c.l.bf16 %v383
      %v416 = vunpack.c.l.bf16 %v384
      %v417 = vunpack.c.l.bf16 %v385
      %v418 = vunpack.c.l.bf16 %v386
      %v419 = vunpack.c.l.bf16 %v387
      %v420 = vunpack.c.l.bf16 %v388
      %v421 = vunpack.c.l.bf16 %v389
      %v422 = vunpack.c.l.bf16 %v390
      %v423 = vadd.f32 %v327, %v391
      %v424 = vadd.f32 %v328, %v392
      %v425 = vadd.f32 %v329, %v393
      %v426 = vadd.f32 %v330, %v394
      %v427 = vadd.f32 %v331, %v395
      %v428 = vadd.f32 %v332, %v396
      %v429 = vadd.f32 %v333, %v397
      %v430 = vadd.f32 %v334, %v398
      %v431 = vadd.f32 %v335, %v399
      %v432 = vadd.f32 %v336, %v400
      %v433 = vadd.f32 %v337, %v401
      %v434 = vadd.f32 %v338, %v402
      %v435 = vadd.f32 %v339, %v403
      %v436 = vadd.f32 %v340, %v404
      %v437 = vadd.f32 %v341, %v405
      %v438 = vadd.f32 %v342, %v406
      %v439 = vadd.f32 %v343, %v407
      %v440 = vadd.f32 %v344, %v408
      %v441 = vadd.f32 %v345, %v409
      %v442 = vadd.f32 %v346, %v410
      %v443 = vadd.f32 %v347, %v411
      %v444 = vadd.f32 %v348, %v412
      %v445 = vadd.f32 %v349, %v413
      %v446 = vadd.f32 %v350, %v414
      %v447 = vadd.f32 %v351, %v415
      %v448 = vadd.f32 %v352, %v416
      %v449 = vadd.f32 %v353, %v417
      %v450 = vadd.f32 %v354, %v418
      %v451 = vadd.f32 %v355, %v419
      %v452 = vadd.f32 %v356, %v420
      %v453 = vadd.f32 %v357, %v421
      %v454 = vadd.f32 %v358, %v422
      %v455 = vmax.f32 %v423, 0.0
      %v456 = vmax.f32 %v424, 0.0
      %v457 = vmax.f32 %v425, 0.0
      %v458 = vmax.f32 %v426, 0.0
      %v459 = vmax.f32 %v427, 0.0
      %v460 = vmax.f32 %v428, 0.0
      %v461 = vmax.f32 %v429, 0.0
      %v462 = vmax.f32 %v430, 0.0
      %v463 = vmax.f32 %v431, 0.0
      %v464 = vmax.f32 %v432, 0.0
      %v465 = vmax.f32 %v433, 0.0
      %v466 = vmax.f32 %v434, 0.0
      %v467 = vmax.f32 %v435, 0.0
      %v468 = vmax.f32 %v436, 0.0
      %v469 = vmax.f32 %v437, 0.0
      %v470 = vmax.f32 %v438, 0.0
      %v471 = vmax.f32 %v439, 0.0
      %v472 = vmax.f32 %v440, 0.0
      %v473 = vmax.f32 %v441, 0.0
      %v474 = vmax.f32 %v442, 0.0
      %v475 = vmax.f32 %v443, 0.0
      %v476 = vmax.f32 %v444, 0.0
      %v477 = vmax.f32 %v445, 0.0
      %v478 = vmax.f32 %v446, 0.0
      %v479 = vmax.f32 %v447, 0.0
      %v480 = vmax.f32 %v448, 0.0
      %v481 = vmax.f32 %v449, 0.0
      %v482 = vmax.f32 %v450, 0.0
      %v483 = vmax.f32 %v451, 0.0
      %v484 = vmax.f32 %v452, 0.0
      %v485 = vmax.f32 %v453, 0.0
      %v486 = vmax.f32 %v454, 0.0
      %487 = vst [vmem:[%s221] sm:$0xff] %v455
      %488 = vst [vmem:[%s221 + $0x8] sm:$0xff] %v456
      %489 = vst [vmem:[%s221 + $0x10] sm:$0xff] %v457
      %490 = vst [vmem:[%s221 + $0x18] sm:$0xff] %v458
      %491 = vst [vmem:[%s221 + $0x20] sm:$0xff] %v459
      %492 = vst [vmem:[%s221 + $0x28] sm:$0xff] %v460
      %493 = vst [vmem:[%s221 + $0x30] sm:$0xff] %v461
      %494 = vst [vmem:[%s221 + $0x38] sm:$0xff] %v462
      %495 = vst [vmem:[%s221 + $0x40] sm:$0xff] %v463
      %496 = vst [vmem:[%s221 + $0x48] sm:$0xff] %v464
      %497 = vst [vmem:[%s221 + $0x50] sm:$0xff] %v465
      %498 = vst [vmem:[%s221 + $0x58] sm:$0xff] %v466
      %499 = vst [vmem:[%s221 + $0x60] sm:$0xff] %v467
      %500 = vst [vmem:[%s221 + $0x68] sm:$0xff] %v468
      %501 = vst [vmem:[%s221 + $0x70] sm:$0xff] %v469
      %502 = vst [vmem:[%s221 + $0x78] sm:$0xff] %v470
      %503 = vst [vmem:[%s221 + $0x80] sm:$0xff] %v471
      %504 = vst [vmem:[%s221 + $0x88] sm:$0xff] %v472
      %505 = vst [vmem:[%s221 + $0x90] sm:$0xff] %v473
      %506 = vst [vmem:[%s221 + $0x98] sm:$0xff] %v474
      %507 = vst [vmem:[%s221 + $0xa0] sm:$0xff] %v475
      %508 = vst [vmem:[%s221 + $0xa8] sm:$0xff] %v476
      %509 = vst [vmem:[%s221 + $0xb0] sm:$0xff] %v477
      %510 = vst [vmem:[%s221 + $0xb8] sm:$0xff] %v478
      %511 = vst [vmem:[%s221 + $0xc0] sm:$0xff] %v479
      %512 = vst [vmem:[%s221 + $0xc8] sm:$0xff] %v480
      %513 = vst [vmem:[%s221 + $0xd0] sm:$0xff] %v481
      %514 = vst [vmem:[%s221 + $0xd8] sm:$0xff] %v482
      %515 = vst [vmem:[%s221 + $0xe0] sm:$0xff] %v483
      %516 = vst [vmem:[%s221 + $0xe8] sm:$0xff] %v484
      %517 = vst [vmem:[%s221 + $0xf0] sm:$0xff] %v485
      %518 = vst [vmem:[%s221 + $0xf8] sm:$0xff] %v486
      %s519 = smul.u32 32, %s15
      %p520 = scmp.lt.s32.totalorder %s519, 63
      %s521 = scalar_select %p520, %s519, 63
      %s522 = smul.addr %s521, 8
      %s523 = scalar_lea.vmem %s4, %s522
      // Predicated region
      $region37: #{basicblock_forward.7} parent=35 // pred_check
        %p524 = pneg %p127
      $region38: #{basicblock_forward.7} parent=35 // pred_check_branch
        %526 = sbr.rel (%p524) target = $region40
      $region39: #{basicblock_forward.7} parent=35 // pred_region
        %s527 = smul.u32 32, %s15
      $region40: #{basicblock_forward.7} parent=35 // pred_fallthru
        _
    $region36: #{basicblock_forward.7} parent=5 // pred_fallthru
      _
    %p528 = scmp.le.s32.totalorder 2, %s10
    // Predicated region
    $region41: #{basicblock_forward.7} parent=5 // pred_check
      %p529 = pneg %p528
    $region42: #{basicblock_forward.7} parent=5 // pred_check_branch
      %531 = sbr.rel (%p529) target = $region44
    $region43: #{basicblock_forward.7} parent=5 // pred_region
      %s532 = ssub.s32 %s10, 2
      // Predicated region
      $region45: #{basicblock_forward.7} parent=43 // pred_check
        %p533 = pneg %p133
      $region46: #{basicblock_forward.7} parent=43 // pred_check_branch
        %535 = sbr.rel (%p533) target = $region48
      $region47: #{basicblock_forward.7} parent=43 // pred_region
        %s536 = smul.u32 32, %s16
        %p537 = scmp.lt.s32.totalorder %s536, 63
        %s538 = scalar_select %p537, %s536, 63
        %s539 = smul.addr %s538, 8
        %s540 = scalar_lea.vmem %s4, %s539
      $region48: #{basicblock_forward.7} parent=43 // pred_fallthru
        _
    $region44: #{basicblock_forward.7} parent=5 // pred_fallthru
      _
  $region6: #{basicblock_forward.7} parent=0 // loop_footer
    %s14 = sadd.s32 1, %s10
  $region7: #{basicblock_forward.7} parent=0 // loop_footer_branch
    %9 = sbr.rel target = $region3
  $region8: #{basicblock_forward.7} parent=0 // loop_exit
    _

</llo_original>
